<compile_context>
chip_gen: v6e
topology: v6e:2x2x1
jax: 0.10.0
libtpu: 0.0.40
codegen_flags: <defaults>
</compile_context>

<pallas_src>
import functools
import math

import jax
import jax.numpy as jnp
from jax.experimental import pallas as pl
from jax.experimental.pallas import tpu as pltpu

_LN2 = math.log(2.0)


def _ssp(x):
    # shifted softplus: log(1 + exp(x)) - log(2)  (numerically stable form)
    return jnp.maximum(x, 0.0) + jnp.log1p(jnp.exp(-jnp.abs(x))) - _LN2


def _cosine_cutoff(r, cutoff):
    return 0.5 * (jnp.cos(r * (math.pi / cutoff)) + 1.0) * (r < cutoff).astype(r.dtype)


def _int_pow(u, n):
    # exponentiation by squaring (VPU multiplies only, no EUP exp/log)
    if n == 1:
        return u
    h = _int_pow(u, n // 2)
    s = h * h
    return s if (n % 2 == 0) else s * u


def _round_up(x, m):
    return ((x + m - 1) // m) * m


# -----------------------------------------------------------------------------
# Pallas kernel 1: radial filters of the triple legs + cosine cutoff + angular
# (ANI-style) distribution, masked and reduced over the triple-neighbor axis T.
# Output written lane-dense as (At_tile, n_theta * n_gauss_triple).
# -----------------------------------------------------------------------------
def _triple_kernel(rij_ref, rik_ref, rjk_ref, mask_ref,
                   goff_ref, cth_ref, sth_ref, o_ref,
                   *, gauss_coeff, cutoff, zeta, n_theta):
    rij = rij_ref[...]            # (ta, T)
    rik = rik_ref[...]
    rjk = rjk_ref[...]
    mask = mask_ref[...]          # (ta, T)
    goff = goff_ref[...]          # (1, G)
    cth = cth_ref[...]            # (1, NT)  cos(theta_s)
    sth = sth_ref[...]            # (1, NT)  sin(theta_s)
    G = goff.shape[-1]

    # Fused radial filters of both legs: ONE exp instead of two, then fold the
    # two cosine cutoffs, the triple mask AND the angular 2^(1-zeta) prefactor
    # into the radial part (equivalent to applying them to the angular part
    # since the product is contracted over T).
    prefac = 2.0 ** (1.0 - zeta)
    cut = prefac * (_cosine_cutoff(rij, cutoff)
                    * _cosine_cutoff(rik, cutoff) * mask)      # (ta, T)
    d_ij = rij[..., None] - goff[None, :, :]          # (ta, T, G)
    d_ik = rik[..., None] - goff[None, :, :]
    radial = jnp.exp(gauss_coeff * (d_ij * d_ij + d_ik * d_ik)) * cut[..., None]

    # angle between the two legs (law of cosines)
    # TODO(synk): exact AngularDistribution source not provided; ANI-style form assumed.
    eps = 1e-10
    cos_t = (rij * rij + rik * rik - rjk * rjk) / (2.0 * rij * rik + eps)
    cos_t = jnp.clip(cos_t, -1.0, 1.0)
    sin_t = jnp.sqrt(jnp.maximum(1.0 - cos_t * cos_t, 0.0))

    zi = int(zeta)
    use_int_pow = (float(zi) == float(zeta)) and zi >= 1

    for nt in range(n_theta):
        c = cth[0:1, nt:nt + 1]                       # (1, 1) -> broadcast on VPU
        s = sth[0:1, nt:nt + 1]
        u = 1.0 + cos_t * c + sin_t * s               # (ta, T) = 1 + cos(theta - theta_s)
        if use_int_pow:
            ang = _int_pow(u, zi)                     # repeated squaring, no EUP
        else:
            ang = jnp.exp(zeta * jnp.log(jnp.maximum(u, 1e-20)))
        # VPU contraction over the (small) triple axis T -> (ta, G)
        contrib = jnp.sum(ang[..., None] * radial, axis=1)
        # write directly into the lane-dense (ta, NT*G) output block
        o_ref[:, nt * G:(nt + 1) * G] = contrib


def triple_distribution(r_ij, r_ik, r_jk, triple_mask, goff, cos_ts, sin_ts,
                        *, gauss_coeff, cutoff, zeta, atom_tile=256):
    B, At, T = r_ij.shape
    G = goff.shape[-1]
    NT = cos_ts.shape[-1]

    # tile the atom axis (multiple of 8) so large systems fit VMEM (v7x: 64 MiB)
    ta = At
    if At > atom_tile:
        for t in range(atom_tile, 7, -8):
            if At % t == 0:
                ta = t
                break

    kern = functools.partial(_triple_kernel, gauss_coeff=gauss_coeff,
                             cutoff=cutoff, zeta=zeta, n_theta=NT)
    dspec = pl.BlockSpec((None, ta, T), lambda b, a: (b, a, 0))
    gspec = pl.BlockSpec((1, G), lambda b, a: (0, 0))
    tspec = pl.BlockSpec((1, NT), lambda b, a: (0, 0))
    out = pl.pallas_call(
        kern,
        out_shape=jax.ShapeDtypeStruct((B, At, NT * G), jnp.float32),
        grid=(B, At // ta),
        in_specs=[dspec, dspec, dspec, dspec, gspec, tspec, tspec],
        out_specs=pl.BlockSpec((None, ta, NT * G), lambda b, a: (b, a, 0)),
        compiler_params=pltpu.CompilerParams(
            dimension_semantics=("parallel", "parallel"),
            vmem_limit_bytes=64 * 1024 * 1024),
    )(r_ij, r_ik, r_jk, triple_mask, goff, cos_ts, sin_ts)
    return out


# -----------------------------------------------------------------------------
# Pallas kernel 2: ALL SchNetInteractionDouble blocks fused into one call.
#   per interaction l:
#     filternet (2 dense) on the cached f_double -> cutoff*mask modulation ->
#     in2f -> per-row gather of neighbor features -> sum over neighbors ->
#     f2out(ssp) -> dense -> residual
#   f_double = exp(coeff*(r - offs)^2) and cm = cutoff(r)*mask are interaction-
#   invariant -> computed ONCE per batch element (l == 0) and cached in VMEM.
#   The residual state x is carried in a VMEM scratch across the interaction axis.
# -----------------------------------------------------------------------------
def _interactions_kernel(nbr_sp, x_ref, r_ref, mask_ref, offs_ref,
                         wf1_ref, bf1_ref, wf2_ref, bf2_ref,
                         win_ref, wout_ref, bout_ref, wd_ref, bd_ref,
                         o_ref, x_scr, y_scr, ynbr_scr, f2d_scr, cm_scr,
                         *, cutoff, gauss_coeff):
    b = pl.program_id(0)
    l = pl.program_id(1)
    n_inter = pl.num_programs(1)

    At, F = x_scr.shape
    AtN, nf = ynbr_scr.shape
    Nbr = r_ref.shape[-1]

    # first interaction for this batch element: load the embedding into the
    # carry and build the interaction-invariant quantities once.
    @pl.when(l == 0)
    def _():
        x_scr[...] = x_ref[...]
        r = r_ref[...]                                       # (At, Nbr)
        # Gaussian expansion of pair distances (no f_double in HBM).  Nbr is
        # padded to a multiple of 8 -> the (At, Nbr, G) -> (At*Nbr, G) reshape
        # is a tile-aligned sublane merge (no relayout copy).
        d = r[..., None] - offs_ref[...][None, :, :]         # (At, Nbr, G)
        f2d_scr[...] = jnp.exp(gauss_coeff * d * d).reshape(AtN, -1)
        # cosine-cutoff + neighbor-mask modulation (also interaction-invariant)
        cm_scr[...] = _cosine_cutoff(r, cutoff) * mask_ref[...]

    x = x_scr[...]                       # (At, F)
    f2d = f2d_scr[...]                   # (At*Nbr, G)  cached
    cm = cm_scr[...]                     # (At, Nbr)    cached

    # filter-generating network: Dense(G->nf, ssp) -> Dense(nf->nf, linear)
    h = _ssp(jnp.dot(f2d, wf1_ref[...], preferred_element_type=jnp.float32)
             + bf1_ref[...])
    Wf = jnp.dot(h, wf2_ref[...], preferred_element_type=jnp.float32) + bf2_ref[...]
    Wf = Wf.reshape(At, Nbr, nf) * cm[..., None]

    # in2f (bias-free dense) on the current representation
    y_scr[...] = jnp.dot(x, win_ref[...], preferred_element_type=jnp.float32)

    # neighbor gather: per-row dynamic-slice copy on the VMEM-resident y
    # (O(At*Nbr*nf) data movement; indices read from SMEM via scalar prefetch).
    @pl.loop(0, AtN)
    def _(n):
        idx = nbr_sp[b, n]
        ynbr_scr[pl.ds(n, 1), :] = y_scr[pl.ds(idx, 1), :]

    y_nbr = ynbr_scr[...].reshape(At, Nbr, nf)
    agg = jnp.sum(y_nbr * Wf, axis=1)                        # (At, nf)

    # f2out with shifted softplus, then linear dense, then residual
    v = _ssp(jnp.dot(agg, wout_ref[...], preferred_element_type=jnp.float32)
             + bout_ref[...])
    v = jnp.dot(v, wd_ref[...], preferred_element_type=jnp.float32) + bd_ref[...]
    new_x = x + v
    x_scr[...] = new_x

    @pl.when(l == n_inter - 1)
    def _():
        o_ref[...] = new_x


def interactions_fused(x, r_double, neighbors, neighbor_mask, stacked, offs_d,
                       *, cutoff, gauss_coeff):
    B, At, F = x.shape
    Nbr = neighbors.shape[-1]
    L = stacked["wf1"].shape[0]
    G = offs_d.shape[-1]
    nf = stacked["wf1"].shape[-1]

    # Pad the neighbor axis to a multiple of 8: padded slots get mask=0 (so they
    # contribute nothing) and a distance beyond the cutoff.
    nbr_p = max(8, _round_up(Nbr, 8))
    if nbr_p != Nbr:
        pad = [(0, 0), (0, 0), (0, nbr_p - Nbr)]
        r_double = jnp.pad(r_double, pad, constant_values=2.0 * cutoff)
        neighbors = jnp.pad(neighbors, pad, constant_values=0)
        neighbor_mask = jnp.pad(neighbor_mask, pad, constant_values=0.0)
    at_n = At * nbr_p
    nbr_flat = neighbors.reshape(B, at_n).astype(jnp.int32)

    kern = functools.partial(_interactions_kernel, cutoff=cutoff,
                             gauss_coeff=gauss_coeff)

    def batch3(b, l, nbr):      # per-batch-element slab, resident across l
        return (b, 0, 0)

    def wmap3(b, l, nbr):       # per-interaction stacked weights
        return (l, 0, 0)

    def const2(b, l, nbr):      # grid-invariant constants
        return (0, 0)

    grid_spec = pltpu.PrefetchScalarGridSpec(
        num_scalar_prefetch=1,                               # neighbor indices -> SMEM
        grid=(B, L),
        in_specs=[
            pl.BlockSpec((None, At, F), batch3),             # x (read at l==0)
            pl.BlockSpec((None, At, nbr_p), batch3),         # r_double
            pl.BlockSpec((None, At, nbr_p), batch3),         # neighbor_mask
            pl.BlockSpec((1, G), const2),                    # gaussian offsets
            pl.BlockSpec((None, G, nf), wmap3),              # wf1
            pl.BlockSpec((None, 1, nf), wmap3),              # bf1
            pl.BlockSpec((None, nf, nf), wmap3),             # wf2
            pl.BlockSpec((None, 1, nf), wmap3),              # bf2
            pl.BlockSpec((None, F, nf), wmap3),              # win2f (no bias)
            pl.BlockSpec((None, nf, F), wmap3),              # wf2out
            pl.BlockSpec((None, 1, F), wmap3),               # bf2out
            pl.BlockSpec((None, F, F), wmap3),               # wdense
            pl.BlockSpec((None, 1, F), wmap3),               # bdense
        ],
        out_specs=pl.BlockSpec((None, At, F), batch3),
        scratch_shapes=[
            pltpu.VMEM((At, F), jnp.float32),                # residual carry
            pltpu.VMEM((At, nf), jnp.float32),               # y = in2f(x)
            pltpu.VMEM((at_n, nf), jnp.float32),             # gathered neighbor feats
            pltpu.VMEM((at_n, G), jnp.float32),              # cached f_double
            pltpu.VMEM((At, nbr_p), jnp.float32),            # cached cutoff*mask
        ],
    )

    # TODO(synk): for very large At on v7x, add an At-tile grid axis (the gather
    # needs the full y, so y would stay whole while W/f are tiled).
    return pl.pallas_call(
        kern,
        out_shape=jax.ShapeDtypeStruct((B, At, F), jnp.float32),
        grid_spec=grid_spec,
        compiler_params=pltpu.CompilerParams(
            dimension_semantics=("parallel", "arbitrary"),
            vmem_limit_bytes=64 * 1024 * 1024),
    )(nbr_flat, x, r_double, neighbor_mask, offs_d,
      stacked["wf1"], stacked["bf1"], stacked["wf2"], stacked["bf2"],
      stacked["win2f"], stacked["wf2out"], stacked["bf2out"],
      stacked["wdense"], stacked["bdense"])


# -----------------------------------------------------------------------------
# Plain-JAX glue: gathers / geometry / parameter setup
# -----------------------------------------------------------------------------
def _gather_positions(positions, idx):
    # positions (B, At, 3), idx (B, At, N) -> (B, At, N, 3)
    return jax.vmap(lambda p, i: p[i])(positions, idx)


def atom_distances(positions, neighbors, neighbor_mask):
    # TODO(synk): cell / cell_offset handling omitted (zero offsets == isolated system).
    pos_j = _gather_positions(positions, neighbors)
    dvec = pos_j - positions[:, :, None, :]
    dist = jnp.sqrt(jnp.sum(dvec * dvec, axis=-1))
    return jnp.where(neighbor_mask != 0, dist, 0.0)


def triples_distances(positions, nbh_j, nbh_k):
    pos_j = _gather_positions(positions, nbh_j)
    pos_k = _gather_positions(positions, nbh_k)
    R_ij = pos_j - positions[:, :, None, :]
    R_ik = pos_k - positions[:, :, None, :]
    R_jk = pos_k - pos_j
    r_ij = jnp.sqrt(jnp.sum(R_ij * R_ij, axis=-1))
    r_ik = jnp.sqrt(jnp.sum(R_ik * R_ik, axis=-1))
    r_jk = jnp.sqrt(jnp.sum(R_jk * R_jk, axis=-1))
    return r_ij, r_ik, r_jk


def init_params(key, *, n_atom_basis, n_filters, n_gauss_double, n_interactions, max_z):
    keys = jax.random.split(key, 1 + n_interactions)
    emb = 0.1 * jax.random.normal(keys[0], (max_z, n_atom_basis), jnp.float32)
    emb = emb.at[0].set(0.0)   # nn.Embedding(padding_idx=0)

    def xavier(k, shape):
        return jax.random.normal(k, shape, jnp.float32) / jnp.sqrt(float(shape[0]))

    interactions = []
    for i in range(n_interactions):
        ks = jax.random.split(keys[1 + i], 5)
        interactions.append(dict(
            wf1=xavier(ks[0], (n_gauss_double, n_filters)),
            bf1=jnp.zeros((1, n_filters), jnp.float32),
            wf2=xavier(ks[1], (n_filters, n_filters)),
            bf2=jnp.zeros((1, n_filters), jnp.float32),
            win2f=xavier(ks[2], (n_atom_basis, n_filters)),        # in2f has no bias
            wf2out=xavier(ks[3], (n_filters, n_atom_basis)),
            bf2out=jnp.zeros((1, n_atom_basis), jnp.float32),
            wdense=xavier(ks[4], (n_atom_basis, n_atom_basis)),
            bdense=jnp.zeros((1, n_atom_basis), jnp.float32),
        ))
    return dict(embedding=emb, interactions=interactions)


def stack_interaction_params(interactions):
    return {k: jnp.stack([p[k] for p in interactions], axis=0)
            for k in interactions[0].keys()}


def schnet_triple_forward(params, inputs, hp):
    Z = inputs["Z"]
    positions = inputs["R"]
    neighbors = inputs["neighbors"]
    neighbor_mask = inputs["neighbor_mask"]
    nbh_j = inputs["neighbor_pairs_j"]
    nbh_k = inputs["neighbor_pairs_k"]
    triple_mask = inputs["neighbor_pairs_mask"]

    # embedding lookup (glue gather)
    x = params["embedding"][Z]

    # distances (glue geometry)
    r_double = atom_distances(positions, neighbors, neighbor_mask)
    r_ij, r_ik, r_jk = triples_distances(positions, nbh_j, nbh_k)

    # angular triple distribution + sum over triple pairs (Pallas kernel, lane-dense out)
    triple_ijk = triple_distribution(
        r_ij, r_ik, r_jk, triple_mask,
        hp["goff_t"], hp["cos_theta_s"], hp["sin_theta_s"],
        gauss_coeff=hp["coeff_t"], cutoff=hp["cutoff"], zeta=hp["zeta"])

    # all interaction blocks fused into one Pallas call (f_double built in-kernel)
    stacked = stack_interaction_params(params["interactions"])
    x = interactions_fused(x, r_double, neighbors, neighbor_mask, stacked,
                           hp["goff_d"], cutoff=hp["cutoff"],
                           gauss_coeff=hp["coeff_d"])

    # TODO(synk): charged_systems branch and return_intermid not implemented (defaults off).
    return jnp.concatenate([x, triple_ijk], axis=-1)


if __name__ == "__main__":
    # small shapes consistent with the module's forward
    B, At, Nbr, T = 2, 8, 6, 10
    n_atom_basis = 32
    n_filters = 32
    n_gauss_double = 16
    n_gauss_triple = 16
    n_theta = 4
    n_interactions = 3
    cutoff = 6.0
    zeta = 8.0
    max_z = 20

    key = jax.random.PRNGKey(0)
    kp, kin = jax.random.split(key)
    params = init_params(kp, n_atom_basis=n_atom_basis, n_filters=n_filters,
                         n_gauss_double=n_gauss_double,
                         n_interactions=n_interactions, max_z=max_z)

    k = jax.random.split(kin, 7)
    positions = jax.random.uniform(k[0], (B, At, 3), jnp.float32, 0.0, 4.0)
    Z = jax.random.randint(k[1], (B, At), 1, max_z)
    neighbors = jax.random.randint(k[2], (B, At, Nbr), 0, At).astype(jnp.int32)
    nbh_j = jax.random.randint(k[3], (B, At, T), 0, At).astype(jnp.int32)
    nbh_k = jax.random.randint(k[4], (B, At, T), 0, At).astype(jnp.int32)
    neighbor_mask = (jax.random.uniform(k[5], (B, At, Nbr)) > 0.2).astype(jnp.float32)
    triple_mask = (jax.random.uniform(k[6], (B, At, T)) > 0.2).astype(jnp.float32)

    width_d = (cutoff - 0.5) / (n_gauss_double - 1)
    width_t = (cutoff - 0.5) / (n_gauss_triple - 1)
    theta_s = jnp.linspace(0.0, math.pi, n_theta, dtype=jnp.float32)
    hp = dict(
        cutoff=cutoff, zeta=zeta,
        coeff_d=-0.5 / width_d ** 2,
        coeff_t=-0.5 / width_t ** 2,
        goff_d=jnp.linspace(0.0, cutoff - 0.5, n_gauss_double,
                            dtype=jnp.float32).reshape(1, n_gauss_double),
        goff_t=jnp.linspace(0.0, cutoff - 0.5, n_gauss_triple,
                            dtype=jnp.float32).reshape(1, n_gauss_triple),
        cos_theta_s=jnp.cos(theta_s).reshape(1, n_theta),
        sin_theta_s=jnp.sin(theta_s).reshape(1, n_theta),
    )

    inputs = dict(Z=Z, R=positions, neighbors=neighbors, neighbor_mask=neighbor_mask,
                  neighbor_pairs_j=nbh_j, neighbor_pairs_k=nbh_k,
                  neighbor_pairs_mask=triple_mask)

    out = schnet_triple_forward(params, inputs, hp)
    out = jax.block_until_ready(out)
    assert out.shape == (B, At, n_atom_basis + n_theta * n_gauss_triple)
    assert bool(jnp.all(jnp.isfinite(out)))
    print("KERNEL_OK")
</pallas_src>

<mosaic_0001>
module attributes {stable_mosaic.version = 11 : i64} {
  func.func @_triple_kernel(%arg0: i32, %arg1: i32, %arg2: memref<1x8x10xf32, #tpu.memory_space<vmem>>, %arg3: memref<1x8x10xf32, #tpu.memory_space<vmem>>, %arg4: memref<1x8x10xf32, #tpu.memory_space<vmem>>, %arg5: memref<1x8x10xf32, #tpu.memory_space<vmem>>, %arg6: memref<1x16xf32, #tpu.memory_space<vmem>>, %arg7: memref<1x4xf32, #tpu.memory_space<vmem>>, %arg8: memref<1x4xf32, #tpu.memory_space<vmem>>, %arg9: memref<1x8x64xf32, #tpu.memory_space<vmem>>) attributes {dimension_semantics = [#tpu.dimension_semantics<parallel>, #tpu.dimension_semantics<parallel>], iteration_bounds = array<i64: 2, 1>, scalar_prefetch = 0 : i64, scratch_operands = 0 : i64, tpu.core_type = #tpu.core_type<tc>, window_params = [{transform_indices = @transform_0, window_bounds = array<i64: 1, 8, 10>}, {transform_indices = @transform_1, window_bounds = array<i64: 1, 8, 10>}, {transform_indices = @transform_2, window_bounds = array<i64: 1, 8, 10>}, {transform_indices = @transform_3, window_bounds = array<i64: 1, 8, 10>}, {pipeline_mode = #tpu.pipeline_mode<synchronous>, transform_indices = @transform_4, window_bounds = array<i64: 1, 16>}, {pipeline_mode = #tpu.pipeline_mode<synchronous>, transform_indices = @transform_5, window_bounds = array<i64: 1, 4>}, {pipeline_mode = #tpu.pipeline_mode<synchronous>, transform_indices = @transform_6, window_bounds = array<i64: 1, 4>}, {transform_indices = @transform_7, window_bounds = array<i64: 1, 8, 64>}]} {
    %c0 = arith.constant 0 : index
    %c0_0 = arith.constant 0 : index
    %c0_1 = arith.constant 0 : index
    %0 = vector.load %arg2[%c0, %c0_0, %c0_1] : memref<1x8x10xf32, #tpu.memory_space<vmem>>, vector<1x8x10xf32>
    %1 = vector.shape_cast %0 : vector<1x8x10xf32> to vector<8x10xf32>
    %c0_2 = arith.constant 0 : index
    %c0_3 = arith.constant 0 : index
    %c0_4 = arith.constant 0 : index
    %2 = vector.load %arg3[%c0_2, %c0_3, %c0_4] : memref<1x8x10xf32, #tpu.memory_space<vmem>>, vector<1x8x10xf32>
    %3 = vector.shape_cast %2 : vector<1x8x10xf32> to vector<8x10xf32>
    %c0_5 = arith.constant 0 : index
    %c0_6 = arith.constant 0 : index
    %c0_7 = arith.constant 0 : index
    %4 = vector.load %arg4[%c0_5, %c0_6, %c0_7] : memref<1x8x10xf32, #tpu.memory_space<vmem>>, vector<1x8x10xf32>
    %5 = vector.shape_cast %4 : vector<1x8x10xf32> to vector<8x10xf32>
    %c0_8 = arith.constant 0 : index
    %c0_9 = arith.constant 0 : index
    %c0_10 = arith.constant 0 : index
    %6 = vector.load %arg5[%c0_8, %c0_9, %c0_10] : memref<1x8x10xf32, #tpu.memory_space<vmem>>, vector<1x8x10xf32>
    %7 = vector.shape_cast %6 : vector<1x8x10xf32> to vector<8x10xf32>
    %c0_11 = arith.constant 0 : index
    %c0_12 = arith.constant 0 : index
    %8 = vector.load %arg6[%c0_11, %c0_12] : memref<1x16xf32, #tpu.memory_space<vmem>>, vector<1x16xf32>
    %c0_13 = arith.constant 0 : index
    %c0_14 = arith.constant 0 : index
    %9 = vector.load %arg7[%c0_13, %c0_14] : memref<1x4xf32, #tpu.memory_space<vmem>>, vector<1x4xf32>
    %c0_15 = arith.constant 0 : index
    %c0_16 = arith.constant 0 : index
    %10 = vector.load %arg8[%c0_15, %c0_16] : memref<1x4xf32, #tpu.memory_space<vmem>>, vector<1x4xf32>
    %cst = arith.constant 0.52359879 : f32
    %11 = vector.broadcast %cst : f32 to vector<8x10xf32>
    %12 = arith.mulf %1, %11 : vector<8x10xf32>
    %13 = math.cos %12 : vector<8x10xf32>
    %cst_17 = arith.constant 1.000000e+00 : f32
    %14 = vector.broadcast %cst_17 : f32 to vector<8x10xf32>
    %15 = arith.addf %13, %14 : vector<8x10xf32>
    %cst_18 = arith.constant 5.000000e-01 : f32
    %16 = vector.broadcast %cst_18 : f32 to vector<8x10xf32>
    %17 = arith.mulf %16, %15 : vector<8x10xf32>
    %cst_19 = arith.constant 6.000000e+00 : f32
    %18 = vector.broadcast %cst_19 : f32 to vector<8x10xf32>
    %19 = arith.cmpf olt, %1, %18 : vector<8x10xf32>
    %20 = arith.extui %19 : vector<8x10xi1> to vector<8x10xi32>
    %21 = arith.sitofp %20 : vector<8x10xi32> to vector<8x10xf32>
    %22 = arith.mulf %17, %21 : vector<8x10xf32>
    %cst_20 = arith.constant 0.52359879 : f32
    %23 = vector.broadcast %cst_20 : f32 to vector<8x10xf32>
    %24 = arith.mulf %3, %23 : vector<8x10xf32>
    %25 = math.cos %24 : vector<8x10xf32>
    %cst_21 = arith.constant 1.000000e+00 : f32
    %26 = vector.broadcast %cst_21 : f32 to vector<8x10xf32>
    %27 = arith.addf %25, %26 : vector<8x10xf32>
    %cst_22 = arith.constant 5.000000e-01 : f32
    %28 = vector.broadcast %cst_22 : f32 to vector<8x10xf32>
    %29 = arith.mulf %28, %27 : vector<8x10xf32>
    %cst_23 = arith.constant 6.000000e+00 : f32
    %30 = vector.broadcast %cst_23 : f32 to vector<8x10xf32>
    %31 = arith.cmpf olt, %3, %30 : vector<8x10xf32>
    %32 = arith.extui %31 : vector<8x10xi1> to vector<8x10xi32>
    %33 = arith.sitofp %32 : vector<8x10xi32> to vector<8x10xf32>
    %34 = arith.mulf %29, %33 : vector<8x10xf32>
    %35 = arith.mulf %22, %34 : vector<8x10xf32>
    %36 = arith.mulf %35, %7 : vector<8x10xf32>
    %cst_24 = arith.constant 7.812500e-03 : f32
    %37 = vector.broadcast %cst_24 : f32 to vector<8x10xf32>
    %38 = arith.mulf %37, %36 : vector<8x10xf32>
    %39 = vector.shape_cast %1 : vector<8x10xf32> to vector<8x10x1xf32>
    %40 = vector.shape_cast %8 : vector<1x16xf32> to vector<1x1x16xf32>
    %41 = vector.broadcast %39 : vector<8x10x1xf32> to vector<8x10x16xf32>
    %42 = vector.broadcast %40 : vector<1x1x16xf32> to vector<8x10x16xf32>
    %43 = arith.subf %41, %42 : vector<8x10x16xf32>
    %44 = vector.shape_cast %3 : vector<8x10xf32> to vector<8x10x1xf32>
    %45 = vector.shape_cast %8 : vector<1x16xf32> to vector<1x1x16xf32>
    %46 = vector.broadcast %44 : vector<8x10x1xf32> to vector<8x10x16xf32>
    %47 = vector.broadcast %45 : vector<1x1x16xf32> to vector<8x10x16xf32>
    %48 = arith.subf %46, %47 : vector<8x10x16xf32>
    %49 = arith.mulf %43, %43 : vector<8x10x16xf32>
    %50 = arith.mulf %48, %48 : vector<8x10x16xf32>
    %51 = arith.addf %49, %50 : vector<8x10x16xf32>
    %cst_25 = arith.constant -3.71900821 : f32
    %52 = vector.broadcast %cst_25 : f32 to vector<8x10x16xf32>
    %53 = arith.mulf %52, %51 : vector<8x10x16xf32>
    %54 = math.exp %53 : vector<8x10x16xf32>
    %55 = vector.shape_cast %38 : vector<8x10xf32> to vector<8x10x1xf32>
    %56 = vector.broadcast %55 : vector<8x10x1xf32> to vector<8x10x16xf32>
    %57 = arith.mulf %54, %56 : vector<8x10x16xf32>
    %58 = arith.mulf %1, %1 : vector<8x10xf32>
    %59 = arith.mulf %3, %3 : vector<8x10xf32>
    %60 = arith.addf %58, %59 : vector<8x10xf32>
    %61 = arith.mulf %5, %5 : vector<8x10xf32>
    %62 = arith.subf %60, %61 : vector<8x10xf32>
    %cst_26 = arith.constant 2.000000e+00 : f32
    %63 = vector.broadcast %cst_26 : f32 to vector<8x10xf32>
    %64 = arith.mulf %63, %1 : vector<8x10xf32>
    %65 = arith.mulf %64, %3 : vector<8x10xf32>
    %cst_27 = arith.constant 1.000000e-10 : f32
    %66 = vector.broadcast %cst_27 : f32 to vector<8x10xf32>
    %67 = arith.addf %65, %66 : vector<8x10xf32>
    %68 = arith.divf %62, %67 : vector<8x10xf32>
    %cst_28 = arith.constant -1.000000e+00 : f32
    %cst_29 = arith.constant 1.000000e+00 : f32
    %69 = vector.broadcast %cst_28 : f32 to vector<8x10xf32>
    %70 = arith.maximumf %69, %68 : vector<8x10xf32>
    %71 = vector.broadcast %cst_29 : f32 to vector<8x10xf32>
    %72 = arith.minimumf %71, %70 : vector<8x10xf32>
    %73 = arith.mulf %72, %72 : vector<8x10xf32>
    %cst_30 = arith.constant 1.000000e+00 : f32
    %74 = vector.broadcast %cst_30 : f32 to vector<8x10xf32>
    %75 = arith.subf %74, %73 : vector<8x10xf32>
    %cst_31 = arith.constant 0.000000e+00 : f32
    %76 = vector.broadcast %cst_31 : f32 to vector<8x10xf32>
    %77 = arith.maximumf %75, %76 : vector<8x10xf32>
    %78 = math.sqrt %77 : vector<8x10xf32>
    %79 = vector.extract_strided_slice %9 {offsets = [0, 0], sizes = [1, 1], strides = [1, 1]} : vector<1x4xf32> to vector<1x1xf32>
    %80 = vector.extract_strided_slice %10 {offsets = [0, 0], sizes = [1, 1], strides = [1, 1]} : vector<1x4xf32> to vector<1x1xf32>
    %81 = vector.broadcast %79 : vector<1x1xf32> to vector<8x10xf32>
    %82 = arith.mulf %72, %81 : vector<8x10xf32>
    %cst_32 = arith.constant 1.000000e+00 : f32
    %83 = vector.broadcast %cst_32 : f32 to vector<8x10xf32>
    %84 = arith.addf %83, %82 : vector<8x10xf32>
    %85 = vector.broadcast %80 : vector<1x1xf32> to vector<8x10xf32>
    %86 = arith.mulf %78, %85 : vector<8x10xf32>
    %87 = arith.addf %84, %86 : vector<8x10xf32>
    %88 = arith.mulf %87, %87 : vector<8x10xf32>
    %89 = arith.mulf %88, %88 : vector<8x10xf32>
    %90 = arith.mulf %89, %89 : vector<8x10xf32>
    %91 = vector.shape_cast %90 : vector<8x10xf32> to vector<8x10x1xf32>
    %92 = vector.broadcast %91 : vector<8x10x1xf32> to vector<8x10x16xf32>
    %93 = arith.mulf %92, %57 : vector<8x10x16xf32>
    %cst_33 = arith.constant dense<0.000000e+00> : vector<8x16xf32>
    %94 = vector.multi_reduction <add>, %93, %cst_33 [1] : vector<8x10x16xf32> to vector<8x16xf32>
    %c0_34 = arith.constant 0 : index
    %c0_35 = arith.constant 0 : index
    %c0_36 = arith.constant 0 : index
    %95 = vector.load %arg9[%c0_34, %c0_35, %c0_36] : memref<1x8x64xf32, #tpu.memory_space<vmem>>, vector<1x8x16xf32>
    %96 = vector.shape_cast %95 : vector<1x8x16xf32> to vector<8x16xf32>
    %97 = vector.shape_cast %94 : vector<8x16xf32> to vector<1x8x16xf32>
    tpu.vector_store %arg9[%c0_34, %c0_35, %c0_36], %97 {strides = array<i32>} : memref<1x8x64xf32, #tpu.memory_space<vmem>>, vector<1x8x16xf32>,
    %98 = vector.extract_strided_slice %9 {offsets = [0, 1], sizes = [1, 1], strides = [1, 1]} : vector<1x4xf32> to vector<1x1xf32>
    %99 = vector.extract_strided_slice %10 {offsets = [0, 1], sizes = [1, 1], strides = [1, 1]} : vector<1x4xf32> to vector<1x1xf32>
    %100 = vector.broadcast %98 : vector<1x1xf32> to vector<8x10xf32>
    %101 = arith.mulf %72, %100 : vector<8x10xf32>
    %cst_37 = arith.constant 1.000000e+00 : f32
    %102 = vector.broadcast %cst_37 : f32 to vector<8x10xf32>
    %103 = arith.addf %102, %101 : vector<8x10xf32>
    %104 = vector.broadcast %99 : vector<1x1xf32> to vector<8x10xf32>
    %105 = arith.mulf %78, %104 : vector<8x10xf32>
    %106 = arith.addf %103, %105 : vector<8x10xf32>
    %107 = arith.mulf %106, %106 : vector<8x10xf32>
    %108 = arith.mulf %107, %107 : vector<8x10xf32>
    %109 = arith.mulf %108, %108 : vector<8x10xf32>
    %110 = vector.shape_cast %109 : vector<8x10xf32> to vector<8x10x1xf32>
    %111 = vector.broadcast %110 : vector<8x10x1xf32> to vector<8x10x16xf32>
    %112 = arith.mulf %111, %57 : vector<8x10x16xf32>
    %cst_38 = arith.constant dense<0.000000e+00> : vector<8x16xf32>
    %113 = vector.multi_reduction <add>, %112, %cst_38 [1] : vector<8x10x16xf32> to vector<8x16xf32>
    %c0_39 = arith.constant 0 : index
    %c0_40 = arith.constant 0 : index
    %c16 = arith.constant 16 : index
    %114 = vector.load %arg9[%c0_39, %c0_40, %c16] : memref<1x8x64xf32, #tpu.memory_space<vmem>>, vector<1x8x16xf32>
    %115 = vector.shape_cast %114 : vector<1x8x16xf32> to vector<8x16xf32>
    %116 = vector.shape_cast %113 : vector<8x16xf32> to vector<1x8x16xf32>
    tpu.vector_store %arg9[%c0_39, %c0_40, %c16], %116 {strides = array<i32>} : memref<1x8x64xf32, #tpu.memory_space<vmem>>, vector<1x8x16xf32>,
    %117 = vector.extract_strided_slice %9 {offsets = [0, 2], sizes = [1, 1], strides = [1, 1]} : vector<1x4xf32> to vector<1x1xf32>
    %118 = vector.extract_strided_slice %10 {offsets = [0, 2], sizes = [1, 1], strides = [1, 1]} : vector<1x4xf32> to vector<1x1xf32>
    %119 = vector.broadcast %117 : vector<1x1xf32> to vector<8x10xf32>
    %120 = arith.mulf %72, %119 : vector<8x10xf32>
    %cst_41 = arith.constant 1.000000e+00 : f32
    %121 = vector.broadcast %cst_41 : f32 to vector<8x10xf32>
    %122 = arith.addf %121, %120 : vector<8x10xf32>
    %123 = vector.broadcast %118 : vector<1x1xf32> to vector<8x10xf32>
    %124 = arith.mulf %78, %123 : vector<8x10xf32>
    %125 = arith.addf %122, %124 : vector<8x10xf32>
    %126 = arith.mulf %125, %125 : vector<8x10xf32>
    %127 = arith.mulf %126, %126 : vector<8x10xf32>
    %128 = arith.mulf %127, %127 : vector<8x10xf32>
    %129 = vector.shape_cast %128 : vector<8x10xf32> to vector<8x10x1xf32>
    %130 = vector.broadcast %129 : vector<8x10x1xf32> to vector<8x10x16xf32>
    %131 = arith.mulf %130, %57 : vector<8x10x16xf32>
    %cst_42 = arith.constant dense<0.000000e+00> : vector<8x16xf32>
    %132 = vector.multi_reduction <add>, %131, %cst_42 [1] : vector<8x10x16xf32> to vector<8x16xf32>
    %c0_43 = arith.constant 0 : index
    %c0_44 = arith.constant 0 : index
    %c32 = arith.constant 32 : index
    %133 = vector.load %arg9[%c0_43, %c0_44, %c32] : memref<1x8x64xf32, #tpu.memory_space<vmem>>, vector<1x8x16xf32>
    %134 = vector.shape_cast %133 : vector<1x8x16xf32> to vector<8x16xf32>
    %135 = vector.shape_cast %132 : vector<8x16xf32> to vector<1x8x16xf32>
    tpu.vector_store %arg9[%c0_43, %c0_44, %c32], %135 {strides = array<i32>} : memref<1x8x64xf32, #tpu.memory_space<vmem>>, vector<1x8x16xf32>,
    %136 = vector.extract_strided_slice %9 {offsets = [0, 3], sizes = [1, 1], strides = [1, 1]} : vector<1x4xf32> to vector<1x1xf32>
    %137 = vector.extract_strided_slice %10 {offsets = [0, 3], sizes = [1, 1], strides = [1, 1]} : vector<1x4xf32> to vector<1x1xf32>
    %138 = vector.broadcast %136 : vector<1x1xf32> to vector<8x10xf32>
    %139 = arith.mulf %72, %138 : vector<8x10xf32>
    %cst_45 = arith.constant 1.000000e+00 : f32
    %140 = vector.broadcast %cst_45 : f32 to vector<8x10xf32>
    %141 = arith.addf %140, %139 : vector<8x10xf32>
    %142 = vector.broadcast %137 : vector<1x1xf32> to vector<8x10xf32>
    %143 = arith.mulf %78, %142 : vector<8x10xf32>
    %144 = arith.addf %141, %143 : vector<8x10xf32>
    %145 = arith.mulf %144, %144 : vector<8x10xf32>
    %146 = arith.mulf %145, %145 : vector<8x10xf32>
    %147 = arith.mulf %146, %146 : vector<8x10xf32>
    %148 = vector.shape_cast %147 : vector<8x10xf32> to vector<8x10x1xf32>
    %149 = vector.broadcast %148 : vector<8x10x1xf32> to vector<8x10x16xf32>
    %150 = arith.mulf %149, %57 : vector<8x10x16xf32>
    %cst_46 = arith.constant dense<0.000000e+00> : vector<8x16xf32>
    %151 = vector.multi_reduction <add>, %150, %cst_46 [1] : vector<8x10x16xf32> to vector<8x16xf32>
    %c0_47 = arith.constant 0 : index
    %c0_48 = arith.constant 0 : index
    %c48 = arith.constant 48 : index
    %152 = vector.load %arg9[%c0_47, %c0_48, %c48] : memref<1x8x64xf32, #tpu.memory_space<vmem>>, vector<1x8x16xf32>
    %153 = vector.shape_cast %152 : vector<1x8x16xf32> to vector<8x16xf32>
    %154 = vector.shape_cast %151 : vector<8x16xf32> to vector<1x8x16xf32>
    tpu.vector_store %arg9[%c0_47, %c0_48, %c48], %154 {strides = array<i32>} : memref<1x8x64xf32, #tpu.memory_space<vmem>>, vector<1x8x16xf32>,
    return
  }
  func.func @transform_0(%arg0: i32, %arg1: i32) -> (i32, i32, i32) {
    %c0_i32 = arith.constant 0 : i32
    %c0_i32_0 = arith.constant 0 : i32
    return %arg0, %arg1, %c0_i32 : i32, i32, i32
  }
  func.func @transform_1(%arg0: i32, %arg1: i32) -> (i32, i32, i32) {
    %c0_i32 = arith.constant 0 : i32
    %c0_i32_0 = arith.constant 0 : i32
    return %arg0, %arg1, %c0_i32 : i32, i32, i32
  }
  func.func @transform_2(%arg0: i32, %arg1: i32) -> (i32, i32, i32) {
    %c0_i32 = arith.constant 0 : i32
    %c0_i32_0 = arith.constant 0 : i32
    return %arg0, %arg1, %c0_i32 : i32, i32, i32
  }
  func.func @transform_3(%arg0: i32, %arg1: i32) -> (i32, i32, i32) {
    %c0_i32 = arith.constant 0 : i32
    %c0_i32_0 = arith.constant 0 : i32
    return %arg0, %arg1, %c0_i32 : i32, i32, i32
  }
  func.func @transform_4(%arg0: i32, %arg1: i32) -> (i32, i32) {
    %c0_i32 = arith.constant 0 : i32
    %c0_i32_0 = arith.constant 0 : i32
    %c0_i32_1 = arith.constant 0 : i32
    return %c0_i32, %c0_i32_0 : i32, i32
  }
  func.func @transform_5(%arg0: i32, %arg1: i32) -> (i32, i32) {
    %c0_i32 = arith.constant 0 : i32
    %c0_i32_0 = arith.constant 0 : i32
    %c0_i32_1 = arith.constant 0 : i32
    return %c0_i32, %c0_i32_0 : i32, i32
  }
  func.func @transform_6(%arg0: i32, %arg1: i32) -> (i32, i32) {
    %c0_i32 = arith.constant 0 : i32
    %c0_i32_0 = arith.constant 0 : i32
    %c0_i32_1 = arith.constant 0 : i32
    return %c0_i32, %c0_i32_0 : i32, i32
  }
  func.func @transform_7(%arg0: i32, %arg1: i32) -> (i32, i32, i32) {
    %c0_i32 = arith.constant 0 : i32
    %c0_i32_0 = arith.constant 0 : i32
    return %arg0, %arg1, %c0_i32 : i32, i32, i32
  }
}

</mosaic_0001>

<llo_original>
// kernel: tpu_custom_call.1
$region0: #{tpu_custom_call.1}
  #allocation0 [shape = 'u32[]', space=smem, size = 0x4, offset = 0x4, fixed_abs, tag = 'smem constant byte address 0x4 - core index']
  #allocation1 [shape = 'u32[144,128]{1,0:T(1,128)}', space=vmem, size = 0x12000, scoped, tag = 'internal scratch']
  %s0 = inlined_call_operand.hbm [shape: f32[2,8,10], index: 0, kind: input, shape index: {}]
  %s1 = inlined_call_operand.hbm [shape: f32[2,8,10], index: 1, kind: input, shape index: {}]
  %s2 = inlined_call_operand.hbm [shape: f32[2,8,10], index: 2, kind: input, shape index: {}]
  %s3 = inlined_call_operand.hbm [shape: f32[2,8,10], index: 3, kind: input, shape index: {}]
  %s4 = inlined_call_operand.vmem [shape: f32[1,16], index: 4, kind: input, shape index: {}]
  %s5 = inlined_call_operand.vmem [shape: f32[1,4], index: 5, kind: input, shape index: {}]
  %s6 = inlined_call_operand.vmem [shape: f32[1,4], index: 6, kind: input, shape index: {}]
  %s7 = inlined_call_operand.hbm [shape: f32[2,8,64], index: 7, kind: output, shape index: {}]
  %s8 = sld [smem:[#allocation0]]
  $region77: #{tpu_custom_call.1} parent=0
    _
  %s10 = ssub.s32 1, %s8
  %s11 = scalar_select 0, %s10, %s8
  $region1: #{tpu_custom_call.1} parent=0
    #allocation2 [shape = 'u8[8192]{0}', space=vmem, size = 0x2000, scoped, tag = 'input window, operand 0']
    #allocation3 [shape = 's32[2]{0}', space=sflag, size = 0x8, scoped, tag = 'scoped memory for tpu_custom_call.1']
    #allocation4 [shape = 's32[2]{0}', space=sflag, size = 0x8, scoped, tag = 'scoped memory for tpu_custom_call.1']
    #allocation5 [shape = 'u8[8192]{0}', space=vmem, size = 0x2000, scoped, tag = 'input window, operand 1']
    #allocation6 [shape = 's32[2]{0}', space=sflag, size = 0x8, scoped, tag = 'scoped memory for tpu_custom_call.1']
    #allocation7 [shape = 'u8[8192]{0}', space=vmem, size = 0x2000, scoped, tag = 'input window, operand 2']
    #allocation8 [shape = 'u8[8192]{0}', space=vmem, size = 0x2000, scoped, tag = 'input window, operand 3']
    #allocation9 [shape = 's32[2]{0}', space=sflag, size = 0x8, scoped, tag = 'scoped memory for tpu_custom_call.1']
    #allocation10 [shape = 'u8[8192]{0}', space=vmem, size = 0x2000, scoped, tag = 'output window, operand 0']
    %12 = vsyncpa [#allocation3], 0
    %s13 = scalar_lea.sflag [#allocation3], 1
    %14 = vsyncpa %s13, 0
    %15 = vsyncpa [#allocation6], 0
    %s16 = scalar_lea.sflag [#allocation6], 1
    %17 = vsyncpa %s16, 0
    %18 = vsyncpa [#allocation9], 0
    %s19 = scalar_lea.sflag [#allocation9], 1
    %20 = vsyncpa %s19, 0
    %21 = vsyncpa [#allocation4], 0
    %s22 = scalar_lea.sflag [#allocation4], 1
    %23 = vsyncpa %s22, 0
    loop: start=0, step=1, limit=4
    $region2: #{tpu_custom_call.1} parent=1 // loop_pre_header
      _
    $region3: #{tpu_custom_call.1} parent=1 // loop_header
      %s25 = sphi 0, %s29
      %p26 = scmp.ge.s32.totalorder %s25, 4
      %s32 = sphi 0, %s44
      %s33 = sphi 0, %s40
      %s34 = sphi 0, %s32
      %s35 = sphi 0, %s33
      %s36 = sphi 0, %s34
      %s37 = sphi 0, %s35
      %s49 = sphi 0, %s51
      %s52 = sphi 0, %s49
      %s53 = sphi 0, %s52
      %s69 = sphi 0, %s53
      %s77 = sphi 0, %s79
      %s80 = sphi 0, %s77
      %s81 = sphi 0, %s80
      %s97 = sphi 0, %s81
      %s105 = sphi 0, %s107
      %s108 = sphi 0, %s105
      %s109 = sphi 0, %s108
      %s125 = sphi 0, %s109
      %s133 = sphi 0, %s135
      %s136 = sphi 0, %s133
      %s137 = sphi 0, %s136
      %s153 = sphi 0, %s137
      %s157 = sphi 0, %s157
      %s159 = sphi 0, %s157
      %s160 = sphi 0, %s159
      %s174 = sphi 0, %s160
      %s178 = sphi 0, %s178
      %s180 = sphi 0, %s178
      %s181 = sphi 0, %s180
      %s195 = sphi 0, %s181
      %s199 = sphi 0, %s199
      %s201 = sphi 0, %s199
      %s202 = sphi 0, %s201
      %s216 = sphi 0, %s202
      %s224 = sphi 0, %s226
      %s227 = sphi 0, %s224
      %s228 = sphi 0, %s227
      %s244 = sphi 0, %s228
    $region4: #{tpu_custom_call.1} parent=1 // loop_header_branch
      %28 = sbr.rel (%p26) target = $region8
    $region5: #{tpu_custom_call.1} parent=1 // loop_body
      %s30 = ssub.s32 %s25, 1
      %s31 = ssub.s32 %s25, 2
      %s38 = sadd.s32 1, %s33
      %p39 = scmp.ge.s32.totalorder %s38, 1
      %s40 = scalar_select %p39, 0, %s38
      %s41 = sadd.s32 1, %s32
      %s42 = scalar_select %p39, %s41, %s32
      %p43 = scmp.ge.s32.totalorder %s42, 2
      %s44 = scalar_select %p43, 0, %s42
      %s45 = ssub.s32 %s32, %s44
      %s46 = ssub.s32 %s33, %s40
      %s47 = sor.u32 %s45, %s46
      %p48 = scmp.eq.s32.totalorder %s47, 0
      %s50 = sadd.s32 %s49, 1
      %s51 = scalar_select %p48, %s49, %s50
      %p54 = pneg %p48
      %p55 = scmp.eq.s32.totalorder %s25, 1
      %p56 = por %p54, %p55
      %p57 = scmp.ne.s32.totalorder %s49, %s52
      %p58 = scmp.eq.s32.totalorder %s25, 0
      %p59 = por %p57, %p58
      %p60 = scmp.ne.s32.totalorder %s49, %s52
      %p61 = scmp.eq.s32.totalorder %s30, 1
      %p62 = por %p60, %p61
      %p63 = scmp.ne.s32.totalorder %s52, %s53
      %p64 = scmp.eq.s32.totalorder %s30, 0
      %p65 = por %p63, %p64
      %p66 = scmp.ne.s32.totalorder %s52, %s53
      %p67 = scmp.eq.s32.totalorder %s31, 1
      %p68 = por %p66, %p67
      %p70 = scmp.ne.s32.totalorder %s53, %s69
      %p71 = scmp.eq.s32.totalorder %s31, 0
      %p72 = por %p70, %p71
      %s73 = ssub.s32 %s32, %s44
      %s74 = ssub.s32 %s33, %s40
      %s75 = sor.u32 %s73, %s74
      %p76 = scmp.eq.s32.totalorder %s75, 0
      %s78 = sadd.s32 %s77, 1
      %s79 = scalar_select %p76, %s77, %s78
      %p82 = pneg %p76
      %p83 = scmp.eq.s32.totalorder %s25, 1
      %p84 = por %p82, %p83
      %p85 = scmp.ne.s32.totalorder %s77, %s80
      %p86 = scmp.eq.s32.totalorder %s25, 0
      %p87 = por %p85, %p86
      %p88 = scmp.ne.s32.totalorder %s77, %s80
      %p89 = scmp.eq.s32.totalorder %s30, 1
      %p90 = por %p88, %p89
      %p91 = scmp.ne.s32.totalorder %s80, %s81
      %p92 = scmp.eq.s32.totalorder %s30, 0
      %p93 = por %p91, %p92
      %p94 = scmp.ne.s32.totalorder %s80, %s81
      %p95 = scmp.eq.s32.totalorder %s31, 1
      %p96 = por %p94, %p95
      %p98 = scmp.ne.s32.totalorder %s81, %s97
      %p99 = scmp.eq.s32.totalorder %s31, 0
      %p100 = por %p98, %p99
      %s101 = ssub.s32 %s32, %s44
      %s102 = ssub.s32 %s33, %s40
      %s103 = sor.u32 %s101, %s102
      %p104 = scmp.eq.s32.totalorder %s103, 0
      %s106 = sadd.s32 %s105, 1
      %s107 = scalar_select %p104, %s105, %s106
      %p110 = pneg %p104
      %p111 = scmp.eq.s32.totalorder %s25, 1
      %p112 = por %p110, %p111
      %p113 = scmp.ne.s32.totalorder %s105, %s108
      %p114 = scmp.eq.s32.totalorder %s25, 0
      %p115 = por %p113, %p114
      %p116 = scmp.ne.s32.totalorder %s105, %s108
      %p117 = scmp.eq.s32.totalorder %s30, 1
      %p118 = por %p116, %p117
      %p119 = scmp.ne.s32.totalorder %s108, %s109
      %p120 = scmp.eq.s32.totalorder %s30, 0
      %p121 = por %p119, %p120
      %p122 = scmp.ne.s32.totalorder %s108, %s109
      %p123 = scmp.eq.s32.totalorder %s31, 1
      %p124 = por %p122, %p123
      %p126 = scmp.ne.s32.totalorder %s109, %s125
      %p127 = scmp.eq.s32.totalorder %s31, 0
      %p128 = por %p126, %p127
      %s129 = ssub.s32 %s32, %s44
      %s130 = ssub.s32 %s33, %s40
      %s131 = sor.u32 %s129, %s130
      %p132 = scmp.eq.s32.totalorder %s131, 0
      %s134 = sadd.s32 %s133, 1
      %s135 = scalar_select %p132, %s133, %s134
      %p138 = pneg %p132
      %p139 = scmp.eq.s32.totalorder %s25, 1
      %p140 = por %p138, %p139
      %p141 = scmp.ne.s32.totalorder %s133, %s136
      %p142 = scmp.eq.s32.totalorder %s25, 0
      %p143 = por %p141, %p142
      %p144 = scmp.ne.s32.totalorder %s133, %s136
      %p145 = scmp.eq.s32.totalorder %s30, 1
      %p146 = por %p144, %p145
      %p147 = scmp.ne.s32.totalorder %s136, %s137
      %p148 = scmp.eq.s32.totalorder %s30, 0
      %p149 = por %p147, %p148
      %p150 = scmp.ne.s32.totalorder %s136, %s137
      %p151 = scmp.eq.s32.totalorder %s31, 1
      %p152 = por %p150, %p151
      %p154 = scmp.ne.s32.totalorder %s137, %s153
      %p155 = scmp.eq.s32.totalorder %s31, 0
      %p156 = por %p154, %p155
      %s158 = sadd.s32 %s157, 1
      %p161 = scmp.eq.s32.totalorder %s25, 1
      %p162 = scmp.ne.s32.totalorder %s157, %s159
      %p163 = scmp.eq.s32.totalorder %s25, 0
      %p164 = por %p162, %p163
      %p165 = scmp.ne.s32.totalorder %s157, %s159
      %p166 = scmp.eq.s32.totalorder %s30, 1
      %p167 = por %p165, %p166
      %p168 = scmp.ne.s32.totalorder %s159, %s160
      %p169 = scmp.eq.s32.totalorder %s30, 0
      %p170 = por %p168, %p169
      %p171 = scmp.ne.s32.totalorder %s159, %s160
      %p172 = scmp.eq.s32.totalorder %s31, 1
      %p173 = por %p171, %p172
      %p175 = scmp.ne.s32.totalorder %s160, %s174
      %p176 = scmp.eq.s32.totalorder %s31, 0
      %p177 = por %p175, %p176
      %s179 = sadd.s32 %s178, 1
      %p182 = scmp.eq.s32.totalorder %s25, 1
      %p183 = scmp.ne.s32.totalorder %s178, %s180
      %p184 = scmp.eq.s32.totalorder %s25, 0
      %p185 = por %p183, %p184
      %p186 = scmp.ne.s32.totalorder %s178, %s180
      %p187 = scmp.eq.s32.totalorder %s30, 1
      %p188 = por %p186, %p187
      %p189 = scmp.ne.s32.totalorder %s180, %s181
      %p190 = scmp.eq.s32.totalorder %s30, 0
      %p191 = por %p189, %p190
      %p192 = scmp.ne.s32.totalorder %s180, %s181
      %p193 = scmp.eq.s32.totalorder %s31, 1
      %p194 = por %p192, %p193
      %p196 = scmp.ne.s32.totalorder %s181, %s195
      %p197 = scmp.eq.s32.totalorder %s31, 0
      %p198 = por %p196, %p197
      %s200 = sadd.s32 %s199, 1
      %p203 = scmp.eq.s32.totalorder %s25, 1
      %p204 = scmp.ne.s32.totalorder %s199, %s201
      %p205 = scmp.eq.s32.totalorder %s25, 0
      %p206 = por %p204, %p205
      %p207 = scmp.ne.s32.totalorder %s199, %s201
      %p208 = scmp.eq.s32.totalorder %s30, 1
      %p209 = por %p207, %p208
      %p210 = scmp.ne.s32.totalorder %s201, %s202
      %p211 = scmp.eq.s32.totalorder %s30, 0
      %p212 = por %p210, %p211
      %p213 = scmp.ne.s32.totalorder %s201, %s202
      %p214 = scmp.eq.s32.totalorder %s31, 1
      %p215 = por %p213, %p214
      %p217 = scmp.ne.s32.totalorder %s202, %s216
      %p218 = scmp.eq.s32.totalorder %s31, 0
      %p219 = por %p217, %p218
      %s220 = ssub.s32 %s32, %s44
      %s221 = ssub.s32 %s33, %s40
      %s222 = sor.u32 %s220, %s221
      %p223 = scmp.eq.s32.totalorder %s222, 0
      %s225 = sadd.s32 %s224, 1
      %s226 = scalar_select %p223, %s224, %s225
      %p229 = pneg %p223
      %p230 = scmp.eq.s32.totalorder %s25, 1
      %p231 = por %p229, %p230
      %p232 = scmp.ne.s32.totalorder %s224, %s227
      %p233 = scmp.eq.s32.totalorder %s25, 0
      %p234 = por %p232, %p233
      %p235 = scmp.ne.s32.totalorder %s224, %s227
      %p236 = scmp.eq.s32.totalorder %s30, 1
      %p237 = por %p235, %p236
      %p238 = scmp.ne.s32.totalorder %s227, %s228
      %p239 = scmp.eq.s32.totalorder %s30, 0
      %p240 = por %p238, %p239
      %p241 = scmp.ne.s32.totalorder %s227, %s228
      %p242 = scmp.eq.s32.totalorder %s31, 1
      %p243 = por %p241, %p242
      %p245 = scmp.ne.s32.totalorder %s228, %s244
      %p246 = scmp.eq.s32.totalorder %s31, 0
      %p247 = por %p245, %p246
      %p248 = scmp.le.s32.totalorder 1, %s25
      %p249 = scmp.lt.s32.totalorder %s25, 3
      %p250 = pnand %p248, %p249
      %p251 = pneg %p250
      // Predicated region
      $region9: #{tpu_custom_call.1} parent=5 // pred_check
        _
      $region10: #{tpu_custom_call.1} parent=5 // pred_check_branch
        %253 = sbr.rel (%p250) target = $region12
      $region11: #{tpu_custom_call.1} parent=5 // pred_region
        %s254 = ssub.s32 %s25, 1
        // Predicated region
        $region13: #{tpu_custom_call.1} parent=11 // pred_check
          %p255 = pneg %p170
        $region14: #{tpu_custom_call.1} parent=11 // pred_check_branch
          %257 = sbr.rel (%p255) target = $region16
        $region15: #{tpu_custom_call.1} parent=11 // pred_region
          _
        $region16: #{tpu_custom_call.1} parent=11 // pred_fallthru
          _
        // Predicated region
        $region17: #{tpu_custom_call.1} parent=11 // pred_check
          %p258 = pneg %p191
        $region18: #{tpu_custom_call.1} parent=11 // pred_check_branch
          %260 = sbr.rel (%p258) target = $region20
        $region19: #{tpu_custom_call.1} parent=11 // pred_region
          _
        $region20: #{tpu_custom_call.1} parent=11 // pred_fallthru
          _
        // Predicated region
        $region21: #{tpu_custom_call.1} parent=11 // pred_check
          %p261 = pneg %p212
        $region22: #{tpu_custom_call.1} parent=11 // pred_check_branch
          %263 = sbr.rel (%p261) target = $region24
        $region23: #{tpu_custom_call.1} parent=11 // pred_region
          _
        $region24: #{tpu_custom_call.1} parent=11 // pred_fallthru
          _
      $region12: #{tpu_custom_call.1} parent=5 // pred_fallthru
        _
      %p264 = scmp.lt.s32.totalorder %s25, 2
      // Predicated region
      $region25: #{tpu_custom_call.1} parent=5 // pred_check
        %p265 = pneg %p264
      $region26: #{tpu_custom_call.1} parent=5 // pred_check_branch
        %267 = sbr.rel (%p265) target = $region28
      $region27: #{tpu_custom_call.1} parent=5 // pred_region
        // Predicated region
        $region29: #{tpu_custom_call.1} parent=27 // pred_check
          %p268 = pneg %p59
        $region30: #{tpu_custom_call.1} parent=27 // pred_check_branch
          %270 = sbr.rel (%p268) target = $region32
        $region31: #{tpu_custom_call.1} parent=27 // pred_region
          %s271 = sand.u32 %s49, 1
          %s272 = scalar_lea.sflag [#allocation3], %s271
          %s273 = sand.u32 %s49, 1
          %s274 = smul.addr %s273, 8
          %s275 = scalar_lea.vmem [#allocation2], %s274
          %s277 = ssub.s32 128, 128
          %278 = vsyncadd %s272, %s277
          %s279 = sadd.s32 %s33, %s32
          %s280 = smul.addr %s279, 128
          %s281 = scalar_lea.hbm %s0, %s280
          %s283 = sshll.u32 %s275, 4
          %s284 = int_to_ptr.vmem [resolvable:$true] %s283
          %286 = dma.hbm_to_vmem [thread:$0]  %s281, 128, %s284, %s272
        $region32: #{tpu_custom_call.1} parent=27 // pred_fallthru
          _
        // Predicated region
        $region33: #{tpu_custom_call.1} parent=27 // pred_check
          %p287 = pneg %p87
        $region34: #{tpu_custom_call.1} parent=27 // pred_check_branch
          %289 = sbr.rel (%p287) target = $region36
        $region35: #{tpu_custom_call.1} parent=27 // pred_region
          %s290 = sand.u32 %s25, 1
          %s291 = scalar_lea.sflag [#allocation6], %s290
          %s292 = sand.u32 %s77, 1
          %s293 = smul.addr %s292, 8
          %s294 = scalar_lea.vmem [#allocation5], %s293
          %s296 = ssub.s32 128, 128
          %297 = vsyncadd %s291, %s296
          %s298 = sadd.s32 %s33, %s32
          %s299 = smul.addr %s298, 128
          %s300 = scalar_lea.hbm %s1, %s299
          %s302 = sshll.u32 %s294, 4
          %s303 = int_to_ptr.vmem [resolvable:$true] %s302
          %305 = dma.hbm_to_vmem [thread:$0]  %s300, 128, %s303, %s291
        $region36: #{tpu_custom_call.1} parent=27 // pred_fallthru
          _
        // Predicated region
        $region37: #{tpu_custom_call.1} parent=27 // pred_check
          %p306 = pneg %p115
        $region38: #{tpu_custom_call.1} parent=27 // pred_check_branch
          %308 = sbr.rel (%p306) target = $region40
        $region39: #{tpu_custom_call.1} parent=27 // pred_region
          %s309 = sand.u32 %s25, 1
          %s310 = scalar_lea.sflag [#allocation6], %s309
          %s311 = sand.u32 %s105, 1
          %s312 = smul.addr %s311, 8
          %s313 = scalar_lea.vmem [#allocation7], %s312
          %s315 = ssub.s32 128, 128
          %316 = vsyncadd %s310, %s315
          %s317 = sadd.s32 %s33, %s32
          %s318 = smul.addr %s317, 128
          %s319 = scalar_lea.hbm %s2, %s318
          %s321 = sshll.u32 %s313, 4
          %s322 = int_to_ptr.vmem [resolvable:$true] %s321
          %324 = dma.hbm_to_vmem [thread:$0]  %s319, 128, %s322, %s310
        $region40: #{tpu_custom_call.1} parent=27 // pred_fallthru
          _
        // Predicated region
        $region41: #{tpu_custom_call.1} parent=27 // pred_check
          %p325 = pneg %p143
        $region42: #{tpu_custom_call.1} parent=27 // pred_check_branch
          %327 = sbr.rel (%p325) target = $region44
        $region43: #{tpu_custom_call.1} parent=27 // pred_region
          %s328 = sand.u32 %s133, 1
          %s329 = scalar_lea.sflag [#allocation9], %s328
          %s330 = sand.u32 %s133, 1
          %s331 = smul.addr %s330, 8
          %s332 = scalar_lea.vmem [#allocation8], %s331
          %s334 = ssub.s32 128, 128
          %335 = vsyncadd %s329, %s334
          %s336 = sadd.s32 %s33, %s32
          %s337 = smul.addr %s336, 128
          %s338 = scalar_lea.hbm %s3, %s337
          %s340 = sshll.u32 %s332, 4
          %s341 = int_to_ptr.vmem [resolvable:$true] %s340
          %343 = dma.hbm_to_vmem [thread:$0]  %s338, 128, %s341, %s329
        $region44: #{tpu_custom_call.1} parent=27 // pred_fallthru
          _
      $region28: #{tpu_custom_call.1} parent=5 // pred_fallthru
        _
      %p344 = scmp.le.s32.totalorder 1, %s25
      %p345 = scmp.lt.s32.totalorder %s25, 3
      %p346 = pnand %p344, %p345
      %p347 = pneg %p346
      // Predicated region
      $region45: #{tpu_custom_call.1} parent=5 // pred_check
        _
      $region46: #{tpu_custom_call.1} parent=5 // pred_check_branch
        %349 = sbr.rel (%p346) target = $region48
      $region47: #{tpu_custom_call.1} parent=5 // pred_region
        %s350 = ssub.s32 %s25, 1
        %s351 = sand.u32 %s52, 1
        %s352 = scalar_lea.sflag [#allocation3], %s351
        %s353 = sand.u32 %s52, 1
        %s354 = smul.addr %s353, 8
        %s355 = scalar_lea.vmem [#allocation2], %s354
        // Predicated region
        $region49: #{tpu_custom_call.1} parent=47 // pred_check
          %p356 = pneg %p65
        $region50: #{tpu_custom_call.1} parent=47 // pred_check_branch
          %358 = sbr.rel (%p356) target = $region52
        $region51: #{tpu_custom_call.1} parent=47 // pred_region
          %359 = dma.done %s352, 128
        $region52: #{tpu_custom_call.1} parent=47 // pred_fallthru
          _
        %s360 = sand.u32 %s30, 1
        %s361 = scalar_lea.sflag [#allocation6], %s360
        %s362 = sand.u32 %s80, 1
        %s363 = smul.addr %s362, 8
        %s364 = scalar_lea.vmem [#allocation5], %s363
        // Predicated region
        $region53: #{tpu_custom_call.1} parent=47 // pred_check
          %p365 = pneg %p93
        $region54: #{tpu_custom_call.1} parent=47 // pred_check_branch
          %367 = sbr.rel (%p365) target = $region56
        $region55: #{tpu_custom_call.1} parent=47 // pred_region
          %368 = dma.done %s361, 128
        $region56: #{tpu_custom_call.1} parent=47 // pred_fallthru
          _
        %s369 = sand.u32 %s30, 1
        %s370 = scalar_lea.sflag [#allocation6], %s369
        %s371 = sand.u32 %s108, 1
        %s372 = smul.addr %s371, 8
        %s373 = scalar_lea.vmem [#allocation7], %s372
        // Predicated region
        $region57: #{tpu_custom_call.1} parent=47 // pred_check
          %p374 = pneg %p121
        $region58: #{tpu_custom_call.1} parent=47 // pred_check_branch
          %376 = sbr.rel (%p374) target = $region60
        $region59: #{tpu_custom_call.1} parent=47 // pred_region
          %377 = dma.done %s370, 128
        $region60: #{tpu_custom_call.1} parent=47 // pred_fallthru
          _
        %s378 = sand.u32 %s136, 1
        %s379 = scalar_lea.sflag [#allocation9], %s378
        %s380 = sand.u32 %s136, 1
        %s381 = smul.addr %s380, 8
        %s382 = scalar_lea.vmem [#allocation8], %s381
        // Predicated region
        $region61: #{tpu_custom_call.1} parent=47 // pred_check
          %p383 = pneg %p149
        $region62: #{tpu_custom_call.1} parent=47 // pred_check_branch
          %385 = sbr.rel (%p383) target = $region64
        $region63: #{tpu_custom_call.1} parent=47 // pred_region
          %386 = dma.done %s379, 128
        $region64: #{tpu_custom_call.1} parent=47 // pred_fallthru
          _
        %s387 = sand.u32 %s52, 1
        %s388 = scalar_lea.sflag [#allocation3], %s387
        %s389 = sand.u32 %s52, 1
        %s390 = smul.addr %s389, 8
        %s391 = scalar_lea.vmem [#allocation2], %s390
        %p392 = pneg %p65
        %p393 = pneg %p62
        %s394 = sand.u32 %s30, 1
        %s395 = scalar_lea.sflag [#allocation6], %s394
        %s396 = sand.u32 %s80, 1
        %s397 = smul.addr %s396, 8
        %s398 = scalar_lea.vmem [#allocation5], %s397
        %p399 = pneg %p93
        %p400 = pneg %p90
        %s401 = sand.u32 %s30, 1
        %s402 = scalar_lea.sflag [#allocation6], %s401
        %s403 = sand.u32 %s108, 1
        %s404 = smul.addr %s403, 8
        %s405 = scalar_lea.vmem [#allocation7], %s404
        %p406 = pneg %p121
        %p407 = pneg %p118
        %s408 = sand.u32 %s136, 1
        %s409 = scalar_lea.sflag [#allocation9], %s408
        %s410 = sand.u32 %s136, 1
        %s411 = smul.addr %s410, 8
        %s412 = scalar_lea.vmem [#allocation8], %s411
        %p413 = pneg %p149
        %p414 = pneg %p146
        %p415 = pneg %p170
        %p416 = pneg %p167
        %p417 = pneg %p191
        %p418 = pneg %p188
        %p419 = pneg %p212
        %p420 = pneg %p209
        %p421 = pneg %p240
        %p422 = pneg %p237
        %s423 = sand.u32 %s227, 1
        %s424 = scalar_lea.sflag [#allocation4], %s423
        %s425 = sand.u32 %s227, 1
        %s426 = smul.addr %s425, 8
        %s427 = scalar_lea.vmem [#allocation10], %s426
        %v428 = vld [vmem:[%s355] sm:$0xff]
        %v429 = vld [vmem:[%s364] sm:$0xff]
        %v430 = vld [vmem:[%s373] sm:$0xff]
        %v431 = vld [vmem:[%s382] sm:$0xff]
        %v432 = vld [vmem:[%s4] sm:$0x1]
        %v433 = vld [vmem:[%s5] sm:$0x1]
        %v434 = vld [vmem:[%s6] sm:$0x1]
        %v435 = vmul.f32 %v428, 0.5235988
        %v436 = vand.u32 2147483647, %v435
        %vm437 = vcmp.le.f32.partialorder %v436, 0.7853982
        %vm438 = vcmp.lt.s32.totalorder %v435, 0
        %v439 = vand.u32 %v435, 2139095040
        %v440 = vshrl.u32 %v439, 23
        %v441 = vsub.s32 %v440, 127
        %v442 = vand.u32 2147483647, %v435
        %v443 = vand.u32 %v442, 8388607
        %v444 = vor.u32 %v443, 8388608
        %v445 = vsub.s32 0, %v444
        %v446 = vadd.s32 %v441, 1
        %vm447 = vcmp.gt.s32.totalorder %v446, 0
        %v448 = vsel %vm447, %v446, 0
        %v449 = vshrl.u32 %v448, 5
        %v450 = vand.u32 %v448, 31
        %v451 = vsub.s32 32, %v450
        %v452 = vshrl.u32 683565275, %v451
        %v453 = vshll.u32 683565275, %v450
        %v454 = vshrl.u32 2475754826, %v451
        %v455 = vor.u32 %v453, %v454
        %v456 = vshll.u32 2475754826, %v450
        %v457 = vshrl.u32 2131351028, %v451
        %v458 = vor.u32 %v456, %v457
        %v459 = vshll.u32 2131351028, %v450
        %v460 = vshrl.u32 2102212464, %v451
        %v461 = vor.u32 %v459, %v460
        %v462 = vshll.u32 2102212464, %v450
        %v463 = vshrl.u32 920167782, %v451
        %v464 = vor.u32 %v462, %v463
        %v465 = vshll.u32 920167782, %v450
        %v466 = vshrl.u32 1326507024, %v451
        %v467 = vor.u32 %v465, %v466
        %vm468 = vcmp.lt.s32.totalorder %v449, 1
        %vm469 = vcmp.lt.s32.totalorder %v449, 2
        %vm470 = vcmp.lt.s32.totalorder %v449, 3
        %vm471 = vcmp.lt.s32.totalorder %v449, 4
        %v472 = vsel %vm468, %v452, %v455
        %v473 = vsel %vm471, %v461, 2102212464
        %v474 = vsel %vm470, %v458, %v473
        %v475 = vsel %vm469, %v472, %v474
        %v476 = vsel %vm468, %v455, %v458
        %v477 = vsel %vm471, %v464, 920167782
        %v478 = vsel %vm470, %v461, %v477
        %v479 = vsel %vm469, %v476, %v478
        %v480 = vsel %vm468, %v458, %v461
        %v481 = vsel %vm471, %v467, 1326507024
        %v482 = vsel %vm470, %v464, %v481
        %v483 = vsel %vm469, %v480, %v482
        %v484 = vshll.u32 %v444, 8
        %v485 = vmul.u32.u64.compose %v484, %v483
        %v486 = vextract.low.u32 %v485
        %v487 = vextract.high.u32 %v485
        %v488 = vmul.u32.u64.compose %v484, %v479
        %v489 = vextract.low.u32 %v488
        %v490 = vextract.high.u32 %v488
        %v491 = vmul.u32 %v484, %v475
        %v492 = vadd.s32 %v487, %v489
        %vm493 = vc.u32 %v487, %v489
        %v494 = vadd.s32 %v490, 1
        %v495 = vsel %vm493, %v494, %v490
        %v496 = vadd.s32 %v491, %v495
        %v497 = vadd.s32 %v496, 536870912
        %v498 = vshrl.u32 %v497, 30
        %v499 = vshll.u32 %v498, 30
        %v500 = vsub.s32 %v496, %v499
        %vm501 = vcmp.lt.s32.totalorder %v500, 0
        %v502 = vsub.s32 0, %v500
        %v503 = vsel %vm501, %v502, %v500
        %v504 = vclz %v503
        %v505 = vsub.s32 %v504, 2
        %vm506 = vcmp.gt.s32.totalorder 0, %v505
        %v507 = vsel %vm506, 0, %v505
        %v508 = vsub.s32 32, %v507
        %v509 = vshll.u32 %v500, %v507
        %v510 = vshrl.u32 %v492, %v508
        %v511 = vor.u32 %v509, %v510
        %v512 = vsub.s32 4294967266, %v507
        %v513 = vadd.s32 %v512, 127
        %v514 = vshll.u32 %v513, 23
        %v515 = vor.u32 4788187, %v514
        %v516 = vand.u32 2147483647, %v515
        %v518 = vcvt.s32.f32 %v511
        %v519 = vmul.f32 %v518, %v516
        %v520 = vxor.u32 %v519, 2147483648
        %v521 = vsel %vm438, %v520, %v519
        %v522 = vsub.s32 4, %v498
        %v523 = vsel %vm438, %v522, %v498
        %v524 = vsel %vm437, %v435, %v521
        %v525 = vsel %vm437, 0, %v523
        %v526 = vcosq.f32.pop %v524
        %v527 = vsinq.f32.pop %v524
        %vm528 = vweird.f32 %v435
        %v529 = vand.u32 %v525, 3
        %vm530 = vcmp.lt.s32.totalorder %v529, 2
        %vm531 = vcmp.eq.s32.totalorder %v529, 0
        %v532 = vxor.u32 %v527, 2147483648
        %v533 = vsel %vm531, %v526, %v532
        %vm534 = vcmp.eq.s32.totalorder %v529, 2
        %v535 = vxor.u32 %v526, 2147483648
        %v536 = vsel %vm534, %v535, %v527
        %v537 = vsel %vm530, %v533, %v536
        %v538 = vsel %vm528, nan, %v537
        %v539 = vadd.f32 %v538, 1.0
        %v540 = vmul.f32 %v539, 0.5
        %vm541 = vcmp.lt.f32.partialorder %v428, 6.0
        %v542 = vsel %vm541, 1, 0
        %v543 = vcvt.s32.f32 %v542
        %v544 = vmul.f32 %v540, %v543
        %v545 = vmul.f32 %v429, 0.5235988
        %v546 = vand.u32 2147483647, %v545
        %vm547 = vcmp.le.f32.partialorder %v546, 0.7853982
        %vm548 = vcmp.lt.s32.totalorder %v545, 0
        %v549 = vand.u32 %v545, 2139095040
        %v550 = vshrl.u32 %v549, 23
        %v551 = vsub.s32 %v550, 127
        %v552 = vand.u32 2147483647, %v545
        %v553 = vand.u32 %v552, 8388607
        %v554 = vor.u32 %v553, 8388608
        %v555 = vsub.s32 0, %v554
        %v556 = vadd.s32 %v551, 1
        %vm557 = vcmp.gt.s32.totalorder %v556, 0
        %v558 = vsel %vm557, %v556, 0
        %v559 = vshrl.u32 %v558, 5
        %v560 = vand.u32 %v558, 31
        %v561 = vsub.s32 32, %v560
        %v562 = vshrl.u32 683565275, %v561
        %v563 = vshll.u32 683565275, %v560
        %v564 = vshrl.u32 2475754826, %v561
        %v565 = vor.u32 %v563, %v564
        %v566 = vshll.u32 2475754826, %v560
        %v567 = vshrl.u32 2131351028, %v561
        %v568 = vor.u32 %v566, %v567
        %v569 = vshll.u32 2131351028, %v560
        %v570 = vshrl.u32 2102212464, %v561
        %v571 = vor.u32 %v569, %v570
        %v572 = vshll.u32 2102212464, %v560
        %v573 = vshrl.u32 920167782, %v561
        %v574 = vor.u32 %v572, %v573
        %v575 = vshll.u32 920167782, %v560
        %v576 = vshrl.u32 1326507024, %v561
        %v577 = vor.u32 %v575, %v576
        %vm578 = vcmp.lt.s32.totalorder %v559, 1
        %vm579 = vcmp.lt.s32.totalorder %v559, 2
        %vm580 = vcmp.lt.s32.totalorder %v559, 3
        %vm581 = vcmp.lt.s32.totalorder %v559, 4
        %v582 = vsel %vm578, %v562, %v565
        %v583 = vsel %vm581, %v571, 2102212464
        %v584 = vsel %vm580, %v568, %v583
        %v585 = vsel %vm579, %v582, %v584
        %v586 = vsel %vm578, %v565, %v568
        %v587 = vsel %vm581, %v574, 920167782
        %v588 = vsel %vm580, %v571, %v587
        %v589 = vsel %vm579, %v586, %v588
        %v590 = vsel %vm578, %v568, %v571
        %v591 = vsel %vm581, %v577, 1326507024
        %v592 = vsel %vm580, %v574, %v591
        %v593 = vsel %vm579, %v590, %v592
        %v594 = vshll.u32 %v554, 8
        %v595 = vmul.u32.u64.compose %v594, %v593
        %v596 = vextract.low.u32 %v595
        %v597 = vextract.high.u32 %v595
        %v598 = vmul.u32.u64.compose %v594, %v589
        %v599 = vextract.low.u32 %v598
        %v600 = vextract.high.u32 %v598
        %v601 = vmul.u32 %v594, %v585
        %v602 = vadd.s32 %v597, %v599
        %vm603 = vc.u32 %v597, %v599
        %v604 = vadd.s32 %v600, 1
        %v605 = vsel %vm603, %v604, %v600
        %v606 = vadd.s32 %v601, %v605
        %v607 = vadd.s32 %v606, 536870912
        %v608 = vshrl.u32 %v607, 30
        %v609 = vshll.u32 %v608, 30
        %v610 = vsub.s32 %v606, %v609
        %vm611 = vcmp.lt.s32.totalorder %v610, 0
        %v612 = vsub.s32 0, %v610
        %v613 = vsel %vm611, %v612, %v610
        %v614 = vclz %v613
        %v615 = vsub.s32 %v614, 2
        %vm616 = vcmp.gt.s32.totalorder 0, %v615
        %v617 = vsel %vm616, 0, %v615
        %v618 = vsub.s32 32, %v617
        %v619 = vshll.u32 %v610, %v617
        %v620 = vshrl.u32 %v602, %v618
        %v621 = vor.u32 %v619, %v620
        %v622 = vsub.s32 4294967266, %v617
        %v623 = vadd.s32 %v622, 127
        %v624 = vshll.u32 %v623, 23
        %v625 = vor.u32 4788187, %v624
        %v626 = vand.u32 2147483647, %v625
        %v628 = vcvt.s32.f32 %v621
        %v629 = vmul.f32 %v628, %v626
        %v630 = vxor.u32 %v629, 2147483648
        %v631 = vsel %vm548, %v630, %v629
        %v632 = vsub.s32 4, %v608
        %v633 = vsel %vm548, %v632, %v608
        %v634 = vsel %vm547, %v545, %v631
        %v635 = vsel %vm547, 0, %v633
        %v636 = vcosq.f32.pop %v634
        %v637 = vsinq.f32.pop %v634
        %vm638 = vweird.f32 %v545
        %v639 = vand.u32 %v635, 3
        %vm640 = vcmp.lt.s32.totalorder %v639, 2
        %vm641 = vcmp.eq.s32.totalorder %v639, 0
        %v642 = vxor.u32 %v637, 2147483648
        %v643 = vsel %vm641, %v636, %v642
        %vm644 = vcmp.eq.s32.totalorder %v639, 2
        %v645 = vxor.u32 %v636, 2147483648
        %v646 = vsel %vm644, %v645, %v637
        %v647 = vsel %vm640, %v643, %v646
        %v648 = vsel %vm638, nan, %v647
        %v649 = vadd.f32 %v648, 1.0
        %v650 = vmul.f32 %v649, 0.5
        %vm651 = vcmp.lt.f32.partialorder %v429, 6.0
        %v652 = vsel %vm651, 1, 0
        %v653 = vcvt.s32.f32 %v652
        %v654 = vmul.f32 %v650, %v653
        %v655 = vmul.f32 %v544, %v654
        %v656 = vmul.f32 %v655, %v431
        %v657 = vmul.f32 %v656, 0.0078125
        %v658 = vlaneseq
        %v659 = vshrl.u32 %v658, 7
        %v660 = vsub.s32 0, %v659
        %v661 = vrot.slane %v428, %v660
        %663 = vbcast.lane.b32.xlu0 %v661, 256
        %v664 = vpop.permute.xlu0 %663
        %s666 = sor.u32 256, 8
        %667 = vbcast.lane.b32.xlu0 %v661, %s666
        %v668 = vpop.permute.xlu0 %667
        %v669 = vlaneseq
        %v670 = vshrl.u32 %v669, 7
        %v671 = vsub.s32 1, %v670
        %v672 = vrot.slane %v428, %v671
        %674 = vbcast.lane.b32.xlu0 %v672, 256
        %v675 = vpop.permute.xlu0 %674
        %s677 = sor.u32 256, 8
        %678 = vbcast.lane.b32.xlu0 %v672, %s677
        %v679 = vpop.permute.xlu0 %678
        %v680 = vlaneseq
        %v681 = vshrl.u32 %v680, 7
        %v682 = vsub.s32 2, %v681
        %v683 = vrot.slane %v428, %v682
        %685 = vbcast.lane.b32.xlu0 %v683, 256
        %v686 = vpop.permute.xlu0 %685
        %s688 = sor.u32 256, 8
        %689 = vbcast.lane.b32.xlu0 %v683, %s688
        %v690 = vpop.permute.xlu0 %689
        %v691 = vlaneseq
        %v692 = vshrl.u32 %v691, 7
        %v693 = vsub.s32 3, %v692
        %v694 = vrot.slane %v428, %v693
        %696 = vbcast.lane.b32.xlu0 %v694, 256
        %v697 = vpop.permute.xlu0 %696
        %s699 = sor.u32 256, 8
        %700 = vbcast.lane.b32.xlu0 %v694, %s699
        %v701 = vpop.permute.xlu0 %700
        %v702 = vlaneseq
        %v703 = vshrl.u32 %v702, 7
        %v704 = vsub.s32 4, %v703
        %v705 = vrot.slane %v428, %v704
        %707 = vbcast.lane.b32.xlu0 %v705, 256
        %v708 = vpop.permute.xlu0 %707
        %s710 = sor.u32 256, 8
        %711 = vbcast.lane.b32.xlu0 %v705, %s710
        %v712 = vpop.permute.xlu0 %711
        %v713 = vlaneseq
        %v714 = vshrl.u32 %v713, 7
        %v715 = vsub.s32 5, %v714
        %v716 = vrot.slane %v428, %v715
        %718 = vbcast.lane.b32.xlu0 %v716, 256
        %v719 = vpop.permute.xlu0 %718
        %s721 = sor.u32 256, 8
        %722 = vbcast.lane.b32.xlu0 %v716, %s721
        %v723 = vpop.permute.xlu0 %722
        %v724 = vlaneseq
        %v725 = vshrl.u32 %v724, 7
        %v726 = vsub.s32 6, %v725
        %v727 = vrot.slane %v428, %v726
        %729 = vbcast.lane.b32.xlu0 %v727, 256
        %v730 = vpop.permute.xlu0 %729
        %s732 = sor.u32 256, 8
        %733 = vbcast.lane.b32.xlu0 %v727, %s732
        %v734 = vpop.permute.xlu0 %733
        %v735 = vlaneseq
        %v736 = vshrl.u32 %v735, 7
        %v737 = vsub.s32 7, %v736
        %v738 = vrot.slane %v428, %v737
        %740 = vbcast.lane.b32.xlu0 %v738, 256
        %v741 = vpop.permute.xlu0 %740
        %s743 = sor.u32 256, 8
        %744 = vbcast.lane.b32.xlu0 %v738, %s743
        %v745 = vpop.permute.xlu0 %744
        %v747 = vlaneseq
        %v748 = vshrl.u32 %v747, 7
        %v749 = vsub.s32 0, %v748
        %v750 = vrot.slane %v432, %v749
        %v752 = vsub.f32 %v664, %v750
        %v753 = vsub.f32 %v668, %v750
        %v754 = vsub.f32 %v675, %v750
        %v755 = vsub.f32 %v679, %v750
        %v756 = vsub.f32 %v686, %v750
        %v757 = vsub.f32 %v690, %v750
        %v758 = vsub.f32 %v697, %v750
        %v759 = vsub.f32 %v701, %v750
        %v760 = vsub.f32 %v708, %v750
        %v761 = vsub.f32 %v712, %v750
        %v762 = vsub.f32 %v719, %v750
        %v763 = vsub.f32 %v723, %v750
        %v764 = vsub.f32 %v730, %v750
        %v765 = vsub.f32 %v734, %v750
        %v766 = vsub.f32 %v741, %v750
        %v767 = vsub.f32 %v745, %v750
        %v768 = vlaneseq
        %v769 = vshrl.u32 %v768, 7
        %v770 = vsub.s32 0, %v769
        %v771 = vrot.slane %v429, %v770
        %773 = vbcast.lane.b32.xlu0 %v771, 256
        %v774 = vpop.permute.xlu0 %773
        %s776 = sor.u32 256, 8
        %777 = vbcast.lane.b32.xlu0 %v771, %s776
        %v778 = vpop.permute.xlu0 %777
        %v779 = vlaneseq
        %v780 = vshrl.u32 %v779, 7
        %v781 = vsub.s32 1, %v780
        %v782 = vrot.slane %v429, %v781
        %784 = vbcast.lane.b32.xlu0 %v782, 256
        %v785 = vpop.permute.xlu0 %784
        %s787 = sor.u32 256, 8
        %788 = vbcast.lane.b32.xlu0 %v782, %s787
        %v789 = vpop.permute.xlu0 %788
        %v790 = vlaneseq
        %v791 = vshrl.u32 %v790, 7
        %v792 = vsub.s32 2, %v791
        %v793 = vrot.slane %v429, %v792
        %795 = vbcast.lane.b32.xlu0 %v793, 256
        %v796 = vpop.permute.xlu0 %795
        %s798 = sor.u32 256, 8
        %799 = vbcast.lane.b32.xlu0 %v793, %s798
        %v800 = vpop.permute.xlu0 %799
        %v801 = vlaneseq
        %v802 = vshrl.u32 %v801, 7
        %v803 = vsub.s32 3, %v802
        %v804 = vrot.slane %v429, %v803
        %806 = vbcast.lane.b32.xlu0 %v804, 256
        %v807 = vpop.permute.xlu0 %806
        %s809 = sor.u32 256, 8
        %810 = vbcast.lane.b32.xlu0 %v804, %s809
        %v811 = vpop.permute.xlu0 %810
        %v812 = vlaneseq
        %v813 = vshrl.u32 %v812, 7
        %v814 = vsub.s32 4, %v813
        %v815 = vrot.slane %v429, %v814
        %817 = vbcast.lane.b32.xlu0 %v815, 256
        %v818 = vpop.permute.xlu0 %817
        %s820 = sor.u32 256, 8
        %821 = vbcast.lane.b32.xlu0 %v815, %s820
        %v822 = vpop.permute.xlu0 %821
        %v823 = vlaneseq
        %v824 = vshrl.u32 %v823, 7
        %v825 = vsub.s32 5, %v824
        %v826 = vrot.slane %v429, %v825
        %828 = vbcast.lane.b32.xlu0 %v826, 256
        %v829 = vpop.permute.xlu0 %828
        %s831 = sor.u32 256, 8
        %832 = vbcast.lane.b32.xlu0 %v826, %s831
        %v833 = vpop.permute.xlu0 %832
        %v834 = vlaneseq
        %v835 = vshrl.u32 %v834, 7
        %v836 = vsub.s32 6, %v835
        %v837 = vrot.slane %v429, %v836
        %839 = vbcast.lane.b32.xlu0 %v837, 256
        %v840 = vpop.permute.xlu0 %839
        %s842 = sor.u32 256, 8
        %843 = vbcast.lane.b32.xlu0 %v837, %s842
        %v844 = vpop.permute.xlu0 %843
        %v845 = vlaneseq
        %v846 = vshrl.u32 %v845, 7
        %v847 = vsub.s32 7, %v846
        %v848 = vrot.slane %v429, %v847
        %850 = vbcast.lane.b32.xlu0 %v848, 256
        %v851 = vpop.permute.xlu0 %850
        %s853 = sor.u32 256, 8
        %854 = vbcast.lane.b32.xlu0 %v848, %s853
        %v855 = vpop.permute.xlu0 %854
        %v856 = vsub.f32 %v774, %v750
        %v857 = vsub.f32 %v778, %v750
        %v858 = vsub.f32 %v785, %v750
        %v859 = vsub.f32 %v789, %v750
        %v860 = vsub.f32 %v796, %v750
        %v861 = vsub.f32 %v800, %v750
        %v862 = vsub.f32 %v807, %v750
        %v863 = vsub.f32 %v811, %v750
        %v864 = vsub.f32 %v818, %v750
        %v865 = vsub.f32 %v822, %v750
        %v866 = vsub.f32 %v829, %v750
        %v867 = vsub.f32 %v833, %v750
        %v868 = vsub.f32 %v840, %v750
        %v869 = vsub.f32 %v844, %v750
        %v870 = vsub.f32 %v851, %v750
        %v871 = vsub.f32 %v855, %v750
        %v872 = vmul.f32 %v752, %v752
        %v873 = vmul.f32 %v753, %v753
        %v874 = vmul.f32 %v754, %v754
        %v875 = vmul.f32 %v755, %v755
        %v876 = vmul.f32 %v756, %v756
        %v877 = vmul.f32 %v757, %v757
        %v878 = vmul.f32 %v758, %v758
        %v879 = vmul.f32 %v759, %v759
        %v880 = vmul.f32 %v760, %v760
        %v881 = vmul.f32 %v761, %v761
        %v882 = vmul.f32 %v762, %v762
        %v883 = vmul.f32 %v763, %v763
        %v884 = vmul.f32 %v764, %v764
        %v885 = vmul.f32 %v765, %v765
        %v886 = vmul.f32 %v766, %v766
        %v887 = vmul.f32 %v767, %v767
        %v888 = vmul.f32 %v856, %v856
        %v889 = vmul.f32 %v857, %v857
        %v890 = vmul.f32 %v858, %v858
        %v891 = vmul.f32 %v859, %v859
        %v892 = vmul.f32 %v860, %v860
        %v893 = vmul.f32 %v861, %v861
        %v894 = vmul.f32 %v862, %v862
        %v895 = vmul.f32 %v863, %v863
        %v896 = vmul.f32 %v864, %v864
        %v897 = vmul.f32 %v865, %v865
        %v898 = vmul.f32 %v866, %v866
        %v899 = vmul.f32 %v867, %v867
        %v900 = vmul.f32 %v868, %v868
        %v901 = vmul.f32 %v869, %v869
        %v902 = vmul.f32 %v870, %v870
        %v903 = vmul.f32 %v871, %v871
        %v904 = vadd.f32 %v872, %v888
        %v905 = vadd.f32 %v873, %v889
        %v906 = vadd.f32 %v874, %v890
        %v907 = vadd.f32 %v875, %v891
        %v908 = vadd.f32 %v876, %v892
        %v909 = vadd.f32 %v877, %v893
        %v910 = vadd.f32 %v878, %v894
        %v911 = vadd.f32 %v879, %v895
        %v912 = vadd.f32 %v880, %v896
        %v913 = vadd.f32 %v881, %v897
        %v914 = vadd.f32 %v882, %v898
        %v915 = vadd.f32 %v883, %v899
        %v916 = vadd.f32 %v884, %v900
        %v917 = vadd.f32 %v885, %v901
        %v918 = vadd.f32 %v886, %v902
        %v919 = vadd.f32 %v887, %v903
        %v920 = vmul.f32 %v904, -3.7190082
        %v921 = vmul.f32 %v905, -3.7190082
        %v922 = vmul.f32 %v906, -3.7190082
        %v923 = vmul.f32 %v907, -3.7190082
        %v924 = vmul.f32 %v908, -3.7190082
        %v925 = vmul.f32 %v909, -3.7190082
        %v926 = vmul.f32 %v910, -3.7190082
        %v927 = vmul.f32 %v911, -3.7190082
        %v928 = vmul.f32 %v912, -3.7190082
        %v929 = vmul.f32 %v913, -3.7190082
        %v930 = vmul.f32 %v914, -3.7190082
        %v931 = vmul.f32 %v915, -3.7190082
        %v932 = vmul.f32 %v916, -3.7190082
        %v933 = vmul.f32 %v917, -3.7190082
        %v934 = vmul.f32 %v918, -3.7190082
        %v935 = vmul.f32 %v919, -3.7190082
        %v936 = vmul.f32 %v920, 1.442695
        %v937 = vpow.pop %v936
        %v938 = vmul.f32 %v921, 1.442695
        %v939 = vpow.pop %v938
        %v940 = vmul.f32 %v922, 1.442695
        %v941 = vpow.pop %v940
        %v942 = vmul.f32 %v923, 1.442695
        %v943 = vpow.pop %v942
        %v944 = vmul.f32 %v924, 1.442695
        %v945 = vpow.pop %v944
        %v946 = vmul.f32 %v925, 1.442695
        %v947 = vpow.pop %v946
        %v948 = vmul.f32 %v926, 1.442695
        %v949 = vpow.pop %v948
        %v950 = vmul.f32 %v927, 1.442695
        %v951 = vpow.pop %v950
        %v952 = vmul.f32 %v928, 1.442695
        %v953 = vpow.pop %v952
        %v954 = vmul.f32 %v929, 1.442695
        %v955 = vpow.pop %v954
        %v956 = vmul.f32 %v930, 1.442695
        %v957 = vpow.pop %v956
        %v958 = vmul.f32 %v931, 1.442695
        %v959 = vpow.pop %v958
        %v960 = vmul.f32 %v932, 1.442695
        %v961 = vpow.pop %v960
        %v962 = vmul.f32 %v933, 1.442695
        %v963 = vpow.pop %v962
        %v964 = vmul.f32 %v934, 1.442695
        %v965 = vpow.pop %v964
        %v966 = vmul.f32 %v935, 1.442695
        %v967 = vpow.pop %v966
        %v968 = vlaneseq
        %v969 = vshrl.u32 %v968, 7
        %v970 = vsub.s32 0, %v969
        %v971 = vrot.slane %v657, %v970
        %973 = vbcast.lane.b32.xlu0 %v971, 256
        %v974 = vpop.permute.xlu0 %973
        %s976 = sor.u32 256, 8
        %977 = vbcast.lane.b32.xlu0 %v971, %s976
        %v978 = vpop.permute.xlu0 %977
        %v979 = vlaneseq
        %v980 = vshrl.u32 %v979, 7
        %v981 = vsub.s32 1, %v980
        %v982 = vrot.slane %v657, %v981
        %984 = vbcast.lane.b32.xlu0 %v982, 256
        %v985 = vpop.permute.xlu0 %984
        %s987 = sor.u32 256, 8
        %988 = vbcast.lane.b32.xlu0 %v982, %s987
        %v989 = vpop.permute.xlu0 %988
        %v990 = vlaneseq
        %v991 = vshrl.u32 %v990, 7
        %v992 = vsub.s32 2, %v991
        %v993 = vrot.slane %v657, %v992
        %995 = vbcast.lane.b32.xlu0 %v993, 256
        %v996 = vpop.permute.xlu0 %995
        %s998 = sor.u32 256, 8
        %999 = vbcast.lane.b32.xlu0 %v993, %s998
        %v1000 = vpop.permute.xlu0 %999
        %v1001 = vlaneseq
        %v1002 = vshrl.u32 %v1001, 7
        %v1003 = vsub.s32 3, %v1002
        %v1004 = vrot.slane %v657, %v1003
        %1006 = vbcast.lane.b32.xlu0 %v1004, 256
        %v1007 = vpop.permute.xlu0 %1006
        %s1009 = sor.u32 256, 8
        %1010 = vbcast.lane.b32.xlu0 %v1004, %s1009
        %v1011 = vpop.permute.xlu0 %1010
        %v1012 = vlaneseq
        %v1013 = vshrl.u32 %v1012, 7
        %v1014 = vsub.s32 4, %v1013
        %v1015 = vrot.slane %v657, %v1014
        %1017 = vbcast.lane.b32.xlu0 %v1015, 256
        %v1018 = vpop.permute.xlu0 %1017
        %s1020 = sor.u32 256, 8
        %1021 = vbcast.lane.b32.xlu0 %v1015, %s1020
        %v1022 = vpop.permute.xlu0 %1021
        %v1023 = vlaneseq
        %v1024 = vshrl.u32 %v1023, 7
        %v1025 = vsub.s32 5, %v1024
        %v1026 = vrot.slane %v657, %v1025
        %1028 = vbcast.lane.b32.xlu0 %v1026, 256
        %v1029 = vpop.permute.xlu0 %1028
        %s1031 = sor.u32 256, 8
        %1032 = vbcast.lane.b32.xlu0 %v1026, %s1031
        %v1033 = vpop.permute.xlu0 %1032
        %v1034 = vlaneseq
        %v1035 = vshrl.u32 %v1034, 7
        %v1036 = vsub.s32 6, %v1035
        %v1037 = vrot.slane %v657, %v1036
        %1039 = vbcast.lane.b32.xlu0 %v1037, 256
        %v1040 = vpop.permute.xlu0 %1039
        %s1042 = sor.u32 256, 8
        %1043 = vbcast.lane.b32.xlu0 %v1037, %s1042
        %v1044 = vpop.permute.xlu0 %1043
        %v1045 = vlaneseq
        %v1046 = vshrl.u32 %v1045, 7
        %v1047 = vsub.s32 7, %v1046
        %v1048 = vrot.slane %v657, %v1047
        %1050 = vbcast.lane.b32.xlu0 %v1048, 256
        %v1051 = vpop.permute.xlu0 %1050
        %s1053 = sor.u32 256, 8
        %1054 = vbcast.lane.b32.xlu0 %v1048, %s1053
        %v1055 = vpop.permute.xlu0 %1054
        %v1056 = vmul.f32 %v937, %v974
        %v1057 = vmul.f32 %v939, %v978
        %v1058 = vmul.f32 %v941, %v985
        %v1059 = vmul.f32 %v943, %v989
        %v1060 = vmul.f32 %v945, %v996
        %v1061 = vmul.f32 %v947, %v1000
        %v1062 = vmul.f32 %v949, %v1007
        %v1063 = vmul.f32 %v951, %v1011
        %v1064 = vmul.f32 %v953, %v1018
        %v1065 = vmul.f32 %v955, %v1022
        %v1066 = vmul.f32 %v957, %v1029
        %v1067 = vmul.f32 %v959, %v1033
        %v1068 = vmul.f32 %v961, %v1040
        %v1069 = vmul.f32 %v963, %v1044
        %v1070 = vmul.f32 %v965, %v1051
        %v1071 = vmul.f32 %v967, %v1055
        %v1072 = vmul.f32 %v428, %v428
        %v1073 = vmul.f32 %v429, %v429
        %v1074 = vadd.f32 %v1072, %v1073
        %v1075 = vmul.f32 %v430, %v430
        %v1076 = vsub.f32 %v1074, %v1075
        %v1077 = vmul.f32 %v428, 2.0
        %v1078 = vmul.f32 %v1077, %v429
        %v1079 = vadd.f32 %v1078, 1e-10
        %v1080 = vrcp.pop %v1079
        %v1081 = vmul.f32 %v1076, %v1080
        %v1082 = vmax.f32 %v1081, -1.0
        %v1083 = vmin.f32 %v1082, 1.0
        %v1084 = vmul.f32 %v1083, %v1083
        %v1085 = vsub.f32 1.0, %v1084
        %v1086 = vmax.f32 %v1085, 0.0
        %v1087 = vrsqrt.pop %v1086
        %v1088 = vmul.f32 %v1086, %v1087
        %vm1089 = vcmp.eq.f32.partialorder %v1086, inf
        %v1090 = vsel %vm1089, %v1086, %v1088
        %vm1091 = vcmp.eq.f32.partialorder %v1086, 0.0
        %v1092 = vand.u32 %v1086, 2147483648
        %v1093 = vsel %vm1091, %v1092, %v1090
        %v1095 = vlaneseq
        %v1096 = vshrl.u32 %v1095, 7
        %v1097 = vsub.s32 0, %v1096
        %v1098 = vrot.slane %v433, %v1097
        %1099 = vset.pattern.permute.xlu0 0
        %1100 = vperm.xlu0 %1099, %v1098
        %v1101 = vpop.permute.xlu0 %1100
        %v1103 = vmul.f32 %v1083, %v1101
        %v1104 = vadd.f32 %v1103, 1.0
        %v1106 = vlaneseq
        %v1107 = vshrl.u32 %v1106, 7
        %v1108 = vsub.s32 0, %v1107
        %v1109 = vrot.slane %v434, %v1108
        %1110 = vset.pattern.permute.xlu0 0
        %1111 = vperm.xlu0 %1110, %v1109
        %v1112 = vpop.permute.xlu0 %1111
        %v1114 = vmul.f32 %v1093, %v1112
        %v1115 = vadd.f32 %v1104, %v1114
        %v1116 = vmul.f32 %v1115, %v1115
        %v1117 = vmul.f32 %v1116, %v1116
        %v1118 = vmul.f32 %v1117, %v1117
        %v1119 = vlaneseq
        %v1120 = vshrl.u32 %v1119, 7
        %v1121 = vsub.s32 0, %v1120
        %v1122 = vrot.slane %v1118, %v1121
        %1124 = vbcast.lane.b32.xlu0 %v1122, 256
        %v1125 = vpop.permute.xlu0 %1124
        %s1127 = sor.u32 256, 8
        %1128 = vbcast.lane.b32.xlu0 %v1122, %s1127
        %v1129 = vpop.permute.xlu0 %1128
        %v1130 = vlaneseq
        %v1131 = vshrl.u32 %v1130, 7
        %v1132 = vsub.s32 1, %v1131
        %v1133 = vrot.slane %v1118, %v1132
        %1135 = vbcast.lane.b32.xlu0 %v1133, 256
        %v1136 = vpop.permute.xlu0 %1135
        %s1138 = sor.u32 256, 8
        %1139 = vbcast.lane.b32.xlu0 %v1133, %s1138
        %v1140 = vpop.permute.xlu0 %1139
        %v1141 = vlaneseq
        %v1142 = vshrl.u32 %v1141, 7
        %v1143 = vsub.s32 2, %v1142
        %v1144 = vrot.slane %v1118, %v1143
        %1146 = vbcast.lane.b32.xlu0 %v1144, 256
        %v1147 = vpop.permute.xlu0 %1146
        %s1149 = sor.u32 256, 8
        %1150 = vbcast.lane.b32.xlu0 %v1144, %s1149
        %v1151 = vpop.permute.xlu0 %1150
        %v1152 = vlaneseq
        %v1153 = vshrl.u32 %v1152, 7
        %v1154 = vsub.s32 3, %v1153
        %v1155 = vrot.slane %v1118, %v1154
        %1157 = vbcast.lane.b32.xlu0 %v1155, 256
        %v1158 = vpop.permute.xlu0 %1157
        %s1160 = sor.u32 256, 8
        %1161 = vbcast.lane.b32.xlu0 %v1155, %s1160
        %v1162 = vpop.permute.xlu0 %1161
        %v1163 = vlaneseq
        %v1164 = vshrl.u32 %v1163, 7
        %v1165 = vsub.s32 4, %v1164
        %v1166 = vrot.slane %v1118, %v1165
        %1168 = vbcast.lane.b32.xlu0 %v1166, 256
        %v1169 = vpop.permute.xlu0 %1168
        %s1171 = sor.u32 256, 8
        %1172 = vbcast.lane.b32.xlu0 %v1166, %s1171
        %v1173 = vpop.permute.xlu0 %1172
        %v1174 = vlaneseq
        %v1175 = vshrl.u32 %v1174, 7
        %v1176 = vsub.s32 5, %v1175
        %v1177 = vrot.slane %v1118, %v1176
        %1179 = vbcast.lane.b32.xlu0 %v1177, 256
        %v1180 = vpop.permute.xlu0 %1179
        %s1182 = sor.u32 256, 8
        %1183 = vbcast.lane.b32.xlu0 %v1177, %s1182
        %v1184 = vpop.permute.xlu0 %1183
        %v1185 = vlaneseq
        %v1186 = vshrl.u32 %v1185, 7
        %v1187 = vsub.s32 6, %v1186
        %v1188 = vrot.slane %v1118, %v1187
        %1190 = vbcast.lane.b32.xlu0 %v1188, 256
        %v1191 = vpop.permute.xlu0 %1190
        %s1193 = sor.u32 256, 8
        %1194 = vbcast.lane.b32.xlu0 %v1188, %s1193
        %v1195 = vpop.permute.xlu0 %1194
        %v1196 = vlaneseq
        %v1197 = vshrl.u32 %v1196, 7
        %v1198 = vsub.s32 7, %v1197
        %v1199 = vrot.slane %v1118, %v1198
        %1201 = vbcast.lane.b32.xlu0 %v1199, 256
        %v1202 = vpop.permute.xlu0 %1201
        %s1204 = sor.u32 256, 8
        %1205 = vbcast.lane.b32.xlu0 %v1199, %s1204
        %v1206 = vpop.permute.xlu0 %1205
        %v1207 = vmul.f32 %v1125, %v1056
        %v1208 = vmul.f32 %v1129, %v1057
        %v1209 = vmul.f32 %v1136, %v1058
        %v1210 = vmul.f32 %v1140, %v1059
        %v1211 = vmul.f32 %v1147, %v1060
        %v1212 = vmul.f32 %v1151, %v1061
        %v1213 = vmul.f32 %v1158, %v1062
        %v1214 = vmul.f32 %v1162, %v1063
        %v1215 = vmul.f32 %v1169, %v1064
        %v1216 = vmul.f32 %v1173, %v1065
        %v1217 = vmul.f32 %v1180, %v1066
        %v1218 = vmul.f32 %v1184, %v1067
        %v1219 = vmul.f32 %v1191, %v1068
        %v1220 = vmul.f32 %v1195, %v1069
        %v1221 = vmul.f32 %v1202, %v1070
        %v1222 = vmul.f32 %v1206, %v1071
        %vm1223 = vcmask 130048
        %v1224 = vsel %vm1223, %v1207, 0.0
        %vm1225 = vcmask 123904
        %v1226 = vsel %vm1225, %v1208, 0.0
        %v1227 = vadd.f32 %v1224, %v1226
        %v1228 = vrot.slane %v1227, 4
        %v1229 = vadd.f32 %v1227, %v1228
        %v1230 = vrot.slane %v1229, 2
        %v1231 = vadd.f32 %v1229, %v1230
        %v1232 = vrot.slane %v1231, 1
        %v1233 = vadd.f32 %v1231, %v1232
        %v1234 = vsel %vm1223, %v1209, 0.0
        %v1235 = vsel %vm1225, %v1210, 0.0
        %v1236 = vadd.f32 %v1234, %v1235
        %v1237 = vrot.slane %v1236, 4
        %v1238 = vadd.f32 %v1236, %v1237
        %v1239 = vrot.slane %v1238, 2
        %v1240 = vadd.f32 %v1238, %v1239
        %v1241 = vrot.slane %v1240, 1
        %v1242 = vadd.f32 %v1240, %v1241
        %v1243 = vsel %vm1223, %v1211, 0.0
        %v1244 = vsel %vm1225, %v1212, 0.0
        %v1245 = vadd.f32 %v1243, %v1244
        %v1246 = vrot.slane %v1245, 4
        %v1247 = vadd.f32 %v1245, %v1246
        %v1248 = vrot.slane %v1247, 2
        %v1249 = vadd.f32 %v1247, %v1248
        %v1250 = vrot.slane %v1249, 1
        %v1251 = vadd.f32 %v1249, %v1250
        %v1252 = vsel %vm1223, %v1213, 0.0
        %v1253 = vsel %vm1225, %v1214, 0.0
        %v1254 = vadd.f32 %v1252, %v1253
        %v1255 = vrot.slane %v1254, 4
        %v1256 = vadd.f32 %v1254, %v1255
        %v1257 = vrot.slane %v1256, 2
        %v1258 = vadd.f32 %v1256, %v1257
        %v1259 = vrot.slane %v1258, 1
        %v1260 = vadd.f32 %v1258, %v1259
        %v1261 = vsel %vm1223, %v1215, 0.0
        %v1262 = vsel %vm1225, %v1216, 0.0
        %v1263 = vadd.f32 %v1261, %v1262
        %v1264 = vrot.slane %v1263, 4
        %v1265 = vadd.f32 %v1263, %v1264
        %v1266 = vrot.slane %v1265, 2
        %v1267 = vadd.f32 %v1265, %v1266
        %v1268 = vrot.slane %v1267, 1
        %v1269 = vadd.f32 %v1267, %v1268
        %v1270 = vsel %vm1223, %v1217, 0.0
        %v1271 = vsel %vm1225, %v1218, 0.0
        %v1272 = vadd.f32 %v1270, %v1271
        %v1273 = vrot.slane %v1272, 4
        %v1274 = vadd.f32 %v1272, %v1273
        %v1275 = vrot.slane %v1274, 2
        %v1276 = vadd.f32 %v1274, %v1275
        %v1277 = vrot.slane %v1276, 1
        %v1278 = vadd.f32 %v1276, %v1277
        %v1279 = vsel %vm1223, %v1219, 0.0
        %v1280 = vsel %vm1225, %v1220, 0.0
        %v1281 = vadd.f32 %v1279, %v1280
        %v1282 = vrot.slane %v1281, 4
        %v1283 = vadd.f32 %v1281, %v1282
        %v1284 = vrot.slane %v1283, 2
        %v1285 = vadd.f32 %v1283, %v1284
        %v1286 = vrot.slane %v1285, 1
        %v1287 = vadd.f32 %v1285, %v1286
        %v1288 = vsel %vm1223, %v1221, 0.0
        %v1289 = vsel %vm1225, %v1222, 0.0
        %v1290 = vadd.f32 %v1288, %v1289
        %v1291 = vrot.slane %v1290, 4
        %v1292 = vadd.f32 %v1290, %v1291
        %v1293 = vrot.slane %v1292, 2
        %v1294 = vadd.f32 %v1292, %v1293
        %v1295 = vrot.slane %v1294, 1
        %v1296 = vadd.f32 %v1294, %v1295
        %vm1305 = vcmask 1041409
        %v1306 = vsel %vm1305, %v1242, %v1233
        %vm1307 = vcmask 1042434
        %v1308 = vsel %vm1307, %v1251, %v1306
        %vm1309 = vcmask 1043459
        %v1310 = vsel %vm1309, %v1260, %v1308
        %vm1311 = vcmask 1044484
        %v1312 = vsel %vm1311, %v1269, %v1310
        %vm1313 = vcmask 1045509
        %v1314 = vsel %vm1313, %v1278, %v1312
        %vm1315 = vcmask 1046534
        %v1316 = vsel %vm1315, %v1287, %v1314
        %vm1317 = vcmask 1047559
        %v1318 = vsel %vm1317, %v1296, %v1316
        %1320 = vst.msk [vmem:[%s427] sm:$0xff] %vm1223, %v1318
        %1321 = vset.pattern.permute.xlu0 1
        %1322 = vperm.xlu0 %1321, %v1098
        %v1323 = vpop.permute.xlu0 %1322
        %v1325 = vmul.f32 %v1083, %v1323
        %v1326 = vadd.f32 %v1325, 1.0
        %1327 = vset.pattern.permute.xlu0 1
        %1328 = vperm.xlu0 %1327, %v1109
        %v1329 = vpop.permute.xlu0 %1328
        %v1331 = vmul.f32 %v1093, %v1329
        %v1332 = vadd.f32 %v1326, %v1331
        %v1333 = vmul.f32 %v1332, %v1332
        %v1334 = vmul.f32 %v1333, %v1333
        %v1335 = vmul.f32 %v1334, %v1334
        %v1336 = vlaneseq
        %v1337 = vshrl.u32 %v1336, 7
        %v1338 = vsub.s32 0, %v1337
        %v1339 = vrot.slane %v1335, %v1338
        %1341 = vbcast.lane.b32.xlu0 %v1339, 256
        %v1342 = vpop.permute.xlu0 %1341
        %s1344 = sor.u32 256, 8
        %1345 = vbcast.lane.b32.xlu0 %v1339, %s1344
        %v1346 = vpop.permute.xlu0 %1345
        %v1347 = vlaneseq
        %v1348 = vshrl.u32 %v1347, 7
        %v1349 = vsub.s32 1, %v1348
        %v1350 = vrot.slane %v1335, %v1349
        %1352 = vbcast.lane.b32.xlu0 %v1350, 256
        %v1353 = vpop.permute.xlu0 %1352
        %s1355 = sor.u32 256, 8
        %1356 = vbcast.lane.b32.xlu0 %v1350, %s1355
        %v1357 = vpop.permute.xlu0 %1356
        %v1358 = vlaneseq
        %v1359 = vshrl.u32 %v1358, 7
        %v1360 = vsub.s32 2, %v1359
        %v1361 = vrot.slane %v1335, %v1360
        %1363 = vbcast.lane.b32.xlu0 %v1361, 256
        %v1364 = vpop.permute.xlu0 %1363
        %s1366 = sor.u32 256, 8
        %1367 = vbcast.lane.b32.xlu0 %v1361, %s1366
        %v1368 = vpop.permute.xlu0 %1367
        %v1369 = vlaneseq
        %v1370 = vshrl.u32 %v1369, 7
        %v1371 = vsub.s32 3, %v1370
        %v1372 = vrot.slane %v1335, %v1371
        %1374 = vbcast.lane.b32.xlu0 %v1372, 256
        %v1375 = vpop.permute.xlu0 %1374
        %s1377 = sor.u32 256, 8
        %1378 = vbcast.lane.b32.xlu0 %v1372, %s1377
        %v1379 = vpop.permute.xlu0 %1378
        %v1380 = vlaneseq
        %v1381 = vshrl.u32 %v1380, 7
        %v1382 = vsub.s32 4, %v1381
        %v1383 = vrot.slane %v1335, %v1382
        %1385 = vbcast.lane.b32.xlu0 %v1383, 256
        %v1386 = vpop.permute.xlu0 %1385
        %s1388 = sor.u32 256, 8
        %1389 = vbcast.lane.b32.xlu0 %v1383, %s1388
        %v1390 = vpop.permute.xlu0 %1389
        %v1391 = vlaneseq
        %v1392 = vshrl.u32 %v1391, 7
        %v1393 = vsub.s32 5, %v1392
        %v1394 = vrot.slane %v1335, %v1393
        %1396 = vbcast.lane.b32.xlu0 %v1394, 256
        %v1397 = vpop.permute.xlu0 %1396
        %s1399 = sor.u32 256, 8
        %1400 = vbcast.lane.b32.xlu0 %v1394, %s1399
        %v1401 = vpop.permute.xlu0 %1400
        %v1402 = vlaneseq
        %v1403 = vshrl.u32 %v1402, 7
        %v1404 = vsub.s32 6, %v1403
        %v1405 = vrot.slane %v1335, %v1404
        %1407 = vbcast.lane.b32.xlu0 %v1405, 256
        %v1408 = vpop.permute.xlu0 %1407
        %s1410 = sor.u32 256, 8
        %1411 = vbcast.lane.b32.xlu0 %v1405, %s1410
        %v1412 = vpop.permute.xlu0 %1411
        %v1413 = vlaneseq
        %v1414 = vshrl.u32 %v1413, 7
        %v1415 = vsub.s32 7, %v1414
        %v1416 = vrot.slane %v1335, %v1415
        %1418 = vbcast.lane.b32.xlu0 %v1416, 256
        %v1419 = vpop.permute.xlu0 %1418
        %s1421 = sor.u32 256, 8
        %1422 = vbcast.lane.b32.xlu0 %v1416, %s1421
        %v1423 = vpop.permute.xlu0 %1422
        %v1424 = vmul.f32 %v1342, %v1056
        %v1425 = vmul.f32 %v1346, %v1057
        %v1426 = vmul.f32 %v1353, %v1058
        %v1427 = vmul.f32 %v1357, %v1059
        %v1428 = vmul.f32 %v1364, %v1060
        %v1429 = vmul.f32 %v1368, %v1061
        %v1430 = vmul.f32 %v1375, %v1062
        %v1431 = vmul.f32 %v1379, %v1063
        %v1432 = vmul.f32 %v1386, %v1064
        %v1433 = vmul.f32 %v1390, %v1065
        %v1434 = vmul.f32 %v1397, %v1066
        %v1435 = vmul.f32 %v1401, %v1067
        %v1436 = vmul.f32 %v1408, %v1068
        %v1437 = vmul.f32 %v1412, %v1069
        %v1438 = vmul.f32 %v1419, %v1070
        %v1439 = vmul.f32 %v1423, %v1071
        %v1440 = vsel %vm1223, %v1424, 0.0
        %v1441 = vsel %vm1225, %v1425, 0.0
        %v1442 = vadd.f32 %v1440, %v1441
        %v1443 = vrot.slane %v1442, 4
        %v1444 = vadd.f32 %v1442, %v1443
        %v1445 = vrot.slane %v1444, 2
        %v1446 = vadd.f32 %v1444, %v1445
        %v1447 = vrot.slane %v1446, 1
        %v1448 = vadd.f32 %v1446, %v1447
        %v1449 = vsel %vm1223, %v1426, 0.0
        %v1450 = vsel %vm1225, %v1427, 0.0
        %v1451 = vadd.f32 %v1449, %v1450
        %v1452 = vrot.slane %v1451, 4
        %v1453 = vadd.f32 %v1451, %v1452
        %v1454 = vrot.slane %v1453, 2
        %v1455 = vadd.f32 %v1453, %v1454
        %v1456 = vrot.slane %v1455, 1
        %v1457 = vadd.f32 %v1455, %v1456
        %v1458 = vsel %vm1223, %v1428, 0.0
        %v1459 = vsel %vm1225, %v1429, 0.0
        %v1460 = vadd.f32 %v1458, %v1459
        %v1461 = vrot.slane %v1460, 4
        %v1462 = vadd.f32 %v1460, %v1461
        %v1463 = vrot.slane %v1462, 2
        %v1464 = vadd.f32 %v1462, %v1463
        %v1465 = vrot.slane %v1464, 1
        %v1466 = vadd.f32 %v1464, %v1465
        %v1467 = vsel %vm1223, %v1430, 0.0
        %v1468 = vsel %vm1225, %v1431, 0.0
        %v1469 = vadd.f32 %v1467, %v1468
        %v1470 = vrot.slane %v1469, 4
        %v1471 = vadd.f32 %v1469, %v1470
        %v1472 = vrot.slane %v1471, 2
        %v1473 = vadd.f32 %v1471, %v1472
        %v1474 = vrot.slane %v1473, 1
        %v1475 = vadd.f32 %v1473, %v1474
        %v1476 = vsel %vm1223, %v1432, 0.0
        %v1477 = vsel %vm1225, %v1433, 0.0
        %v1478 = vadd.f32 %v1476, %v1477
        %v1479 = vrot.slane %v1478, 4
        %v1480 = vadd.f32 %v1478, %v1479
        %v1481 = vrot.slane %v1480, 2
        %v1482 = vadd.f32 %v1480, %v1481
        %v1483 = vrot.slane %v1482, 1
        %v1484 = vadd.f32 %v1482, %v1483
        %v1485 = vsel %vm1223, %v1434, 0.0
        %v1486 = vsel %vm1225, %v1435, 0.0
        %v1487 = vadd.f32 %v1485, %v1486
        %v1488 = vrot.slane %v1487, 4
        %v1489 = vadd.f32 %v1487, %v1488
        %v1490 = vrot.slane %v1489, 2
        %v1491 = vadd.f32 %v1489, %v1490
        %v1492 = vrot.slane %v1491, 1
        %v1493 = vadd.f32 %v1491, %v1492
        %v1494 = vsel %vm1223, %v1436, 0.0
        %v1495 = vsel %vm1225, %v1437, 0.0
        %v1496 = vadd.f32 %v1494, %v1495
        %v1497 = vrot.slane %v1496, 4
        %v1498 = vadd.f32 %v1496, %v1497
        %v1499 = vrot.slane %v1498, 2
        %v1500 = vadd.f32 %v1498, %v1499
        %v1501 = vrot.slane %v1500, 1
        %v1502 = vadd.f32 %v1500, %v1501
        %v1503 = vsel %vm1223, %v1438, 0.0
        %v1504 = vsel %vm1225, %v1439, 0.0
        %v1505 = vadd.f32 %v1503, %v1504
        %v1506 = vrot.slane %v1505, 4
        %v1507 = vadd.f32 %v1505, %v1506
        %v1508 = vrot.slane %v1507, 2
        %v1509 = vadd.f32 %v1507, %v1508
        %v1510 = vrot.slane %v1509, 1
        %v1511 = vadd.f32 %v1509, %v1510
        %v1520 = vsel %vm1305, %v1457, %v1448
        %v1521 = vsel %vm1307, %v1466, %v1520
        %v1522 = vsel %vm1309, %v1475, %v1521
        %v1523 = vsel %vm1311, %v1484, %v1522
        %v1524 = vsel %vm1313, %v1493, %v1523
        %v1525 = vsel %vm1315, %v1502, %v1524
        %v1526 = vsel %vm1317, %v1511, %v1525
        %1527 = vrot.lane.b32.xlu0 %v1526, 16
        %v1528 = vpop.permute.xlu0 %1527
        %vm1530 = vcmask 261248
        %1531 = vst.msk [vmem:[%s427] sm:$0xff] %vm1530, %v1528
        %1532 = vset.pattern.permute.xlu0 2
        %1533 = vperm.xlu0 %1532, %v1098
        %v1534 = vpop.permute.xlu0 %1533
        %v1536 = vmul.f32 %v1083, %v1534
        %v1537 = vadd.f32 %v1536, 1.0
        %1538 = vset.pattern.permute.xlu0 2
        %1539 = vperm.xlu0 %1538, %v1109
        %v1540 = vpop.permute.xlu0 %1539
        %v1542 = vmul.f32 %v1093, %v1540
        %v1543 = vadd.f32 %v1537, %v1542
        %v1544 = vmul.f32 %v1543, %v1543
        %v1545 = vmul.f32 %v1544, %v1544
        %v1546 = vmul.f32 %v1545, %v1545
        %v1547 = vlaneseq
        %v1548 = vshrl.u32 %v1547, 7
        %v1549 = vsub.s32 0, %v1548
        %v1550 = vrot.slane %v1546, %v1549
        %1552 = vbcast.lane.b32.xlu0 %v1550, 256
        %v1553 = vpop.permute.xlu0 %1552
        %s1555 = sor.u32 256, 8
        %1556 = vbcast.lane.b32.xlu0 %v1550, %s1555
        %v1557 = vpop.permute.xlu0 %1556
        %v1558 = vlaneseq
        %v1559 = vshrl.u32 %v1558, 7
        %v1560 = vsub.s32 1, %v1559
        %v1561 = vrot.slane %v1546, %v1560
        %1563 = vbcast.lane.b32.xlu0 %v1561, 256
        %v1564 = vpop.permute.xlu0 %1563
        %s1566 = sor.u32 256, 8
        %1567 = vbcast.lane.b32.xlu0 %v1561, %s1566
        %v1568 = vpop.permute.xlu0 %1567
        %v1569 = vlaneseq
        %v1570 = vshrl.u32 %v1569, 7
        %v1571 = vsub.s32 2, %v1570
        %v1572 = vrot.slane %v1546, %v1571
        %1574 = vbcast.lane.b32.xlu0 %v1572, 256
        %v1575 = vpop.permute.xlu0 %1574
        %s1577 = sor.u32 256, 8
        %1578 = vbcast.lane.b32.xlu0 %v1572, %s1577
        %v1579 = vpop.permute.xlu0 %1578
        %v1580 = vlaneseq
        %v1581 = vshrl.u32 %v1580, 7
        %v1582 = vsub.s32 3, %v1581
        %v1583 = vrot.slane %v1546, %v1582
        %1585 = vbcast.lane.b32.xlu0 %v1583, 256
        %v1586 = vpop.permute.xlu0 %1585
        %s1588 = sor.u32 256, 8
        %1589 = vbcast.lane.b32.xlu0 %v1583, %s1588
        %v1590 = vpop.permute.xlu0 %1589
        %v1591 = vlaneseq
        %v1592 = vshrl.u32 %v1591, 7
        %v1593 = vsub.s32 4, %v1592
        %v1594 = vrot.slane %v1546, %v1593
        %1596 = vbcast.lane.b32.xlu0 %v1594, 256
        %v1597 = vpop.permute.xlu0 %1596
        %s1599 = sor.u32 256, 8
        %1600 = vbcast.lane.b32.xlu0 %v1594, %s1599
        %v1601 = vpop.permute.xlu0 %1600
        %v1602 = vlaneseq
        %v1603 = vshrl.u32 %v1602, 7
        %v1604 = vsub.s32 5, %v1603
        %v1605 = vrot.slane %v1546, %v1604
        %1607 = vbcast.lane.b32.xlu0 %v1605, 256
        %v1608 = vpop.permute.xlu0 %1607
        %s1610 = sor.u32 256, 8
        %1611 = vbcast.lane.b32.xlu0 %v1605, %s1610
        %v1612 = vpop.permute.xlu0 %1611
        %v1613 = vlaneseq
        %v1614 = vshrl.u32 %v1613, 7
        %v1615 = vsub.s32 6, %v1614
        %v1616 = vrot.slane %v1546, %v1615
        %1618 = vbcast.lane.b32.xlu0 %v1616, 256
        %v1619 = vpop.permute.xlu0 %1618
        %s1621 = sor.u32 256, 8
        %1622 = vbcast.lane.b32.xlu0 %v1616, %s1621
        %v1623 = vpop.permute.xlu0 %1622
        %v1624 = vlaneseq
        %v1625 = vshrl.u32 %v1624, 7
        %v1626 = vsub.s32 7, %v1625
        %v1627 = vrot.slane %v1546, %v1626
        %1629 = vbcast.lane.b32.xlu0 %v1627, 256
        %v1630 = vpop.permute.xlu0 %1629
        %s1632 = sor.u32 256, 8
        %1633 = vbcast.lane.b32.xlu0 %v1627, %s1632
        %v1634 = vpop.permute.xlu0 %1633
        %v1635 = vmul.f32 %v1553, %v1056
        %v1636 = vmul.f32 %v1557, %v1057
        %v1637 = vmul.f32 %v1564, %v1058
        %v1638 = vmul.f32 %v1568, %v1059
        %v1639 = vmul.f32 %v1575, %v1060
        %v1640 = vmul.f32 %v1579, %v1061
        %v1641 = vmul.f32 %v1586, %v1062
        %v1642 = vmul.f32 %v1590, %v1063
        %v1643 = vmul.f32 %v1597, %v1064
        %v1644 = vmul.f32 %v1601, %v1065
        %v1645 = vmul.f32 %v1608, %v1066
        %v1646 = vmul.f32 %v1612, %v1067
        %v1647 = vmul.f32 %v1619, %v1068
        %v1648 = vmul.f32 %v1623, %v1069
        %v1649 = vmul.f32 %v1630, %v1070
        %v1650 = vmul.f32 %v1634, %v1071
        %v1651 = vsel %vm1223, %v1635, 0.0
        %v1652 = vsel %vm1225, %v1636, 0.0
        %v1653 = vadd.f32 %v1651, %v1652
        %v1654 = vrot.slane %v1653, 4
        %v1655 = vadd.f32 %v1653, %v1654
        %v1656 = vrot.slane %v1655, 2
        %v1657 = vadd.f32 %v1655, %v1656
        %v1658 = vrot.slane %v1657, 1
        %v1659 = vadd.f32 %v1657, %v1658
        %v1660 = vsel %vm1223, %v1637, 0.0
        %v1661 = vsel %vm1225, %v1638, 0.0
        %v1662 = vadd.f32 %v1660, %v1661
        %v1663 = vrot.slane %v1662, 4
        %v1664 = vadd.f32 %v1662, %v1663
        %v1665 = vrot.slane %v1664, 2
        %v1666 = vadd.f32 %v1664, %v1665
        %v1667 = vrot.slane %v1666, 1
        %v1668 = vadd.f32 %v1666, %v1667
        %v1669 = vsel %vm1223, %v1639, 0.0
        %v1670 = vsel %vm1225, %v1640, 0.0
        %v1671 = vadd.f32 %v1669, %v1670
        %v1672 = vrot.slane %v1671, 4
        %v1673 = vadd.f32 %v1671, %v1672
        %v1674 = vrot.slane %v1673, 2
        %v1675 = vadd.f32 %v1673, %v1674
        %v1676 = vrot.slane %v1675, 1
        %v1677 = vadd.f32 %v1675, %v1676
        %v1678 = vsel %vm1223, %v1641, 0.0
        %v1679 = vsel %vm1225, %v1642, 0.0
        %v1680 = vadd.f32 %v1678, %v1679
        %v1681 = vrot.slane %v1680, 4
        %v1682 = vadd.f32 %v1680, %v1681
        %v1683 = vrot.slane %v1682, 2
        %v1684 = vadd.f32 %v1682, %v1683
        %v1685 = vrot.slane %v1684, 1
        %v1686 = vadd.f32 %v1684, %v1685
        %v1687 = vsel %vm1223, %v1643, 0.0
        %v1688 = vsel %vm1225, %v1644, 0.0
        %v1689 = vadd.f32 %v1687, %v1688
        %v1690 = vrot.slane %v1689, 4
        %v1691 = vadd.f32 %v1689, %v1690
        %v1692 = vrot.slane %v1691, 2
        %v1693 = vadd.f32 %v1691, %v1692
        %v1694 = vrot.slane %v1693, 1
        %v1695 = vadd.f32 %v1693, %v1694
        %v1696 = vsel %vm1223, %v1645, 0.0
        %v1697 = vsel %vm1225, %v1646, 0.0
        %v1698 = vadd.f32 %v1696, %v1697
        %v1699 = vrot.slane %v1698, 4
        %v1700 = vadd.f32 %v1698, %v1699
        %v1701 = vrot.slane %v1700, 2
        %v1702 = vadd.f32 %v1700, %v1701
        %v1703 = vrot.slane %v1702, 1
        %v1704 = vadd.f32 %v1702, %v1703
        %v1705 = vsel %vm1223, %v1647, 0.0
        %v1706 = vsel %vm1225, %v1648, 0.0
        %v1707 = vadd.f32 %v1705, %v1706
        %v1708 = vrot.slane %v1707, 4
        %v1709 = vadd.f32 %v1707, %v1708
        %v1710 = vrot.slane %v1709, 2
        %v1711 = vadd.f32 %v1709, %v1710
        %v1712 = vrot.slane %v1711, 1
        %v1713 = vadd.f32 %v1711, %v1712
        %v1714 = vsel %vm1223, %v1649, 0.0
        %v1715 = vsel %vm1225, %v1650, 0.0
        %v1716 = vadd.f32 %v1714, %v1715
        %v1717 = vrot.slane %v1716, 4
        %v1718 = vadd.f32 %v1716, %v1717
        %v1719 = vrot.slane %v1718, 2
        %v1720 = vadd.f32 %v1718, %v1719
        %v1721 = vrot.slane %v1720, 1
        %v1722 = vadd.f32 %v1720, %v1721
        %v1731 = vsel %vm1305, %v1668, %v1659
        %v1732 = vsel %vm1307, %v1677, %v1731
        %v1733 = vsel %vm1309, %v1686, %v1732
        %v1734 = vsel %vm1311, %v1695, %v1733
        %v1735 = vsel %vm1313, %v1704, %v1734
        %v1736 = vsel %vm1315, %v1713, %v1735
        %v1737 = vsel %vm1317, %v1722, %v1736
        %1738 = vrot.lane.b32.xlu0 %v1737, 32
        %v1739 = vpop.permute.xlu0 %1738
        %vm1741 = vcmask 392448
        %1742 = vst.msk [vmem:[%s427] sm:$0xff] %vm1741, %v1739
        %1743 = vset.pattern.permute.xlu0 3
        %1744 = vperm.xlu0 %1743, %v1098
        %v1745 = vpop.permute.xlu0 %1744
        %v1747 = vmul.f32 %v1083, %v1745
        %v1748 = vadd.f32 %v1747, 1.0
        %1749 = vset.pattern.permute.xlu0 3
        %1750 = vperm.xlu0 %1749, %v1109
        %v1751 = vpop.permute.xlu0 %1750
        %v1753 = vmul.f32 %v1093, %v1751
        %v1754 = vadd.f32 %v1748, %v1753
        %v1755 = vmul.f32 %v1754, %v1754
        %v1756 = vmul.f32 %v1755, %v1755
        %v1757 = vmul.f32 %v1756, %v1756
        %v1758 = vlaneseq
        %v1759 = vshrl.u32 %v1758, 7
        %v1760 = vsub.s32 0, %v1759
        %v1761 = vrot.slane %v1757, %v1760
        %1763 = vbcast.lane.b32.xlu0 %v1761, 256
        %v1764 = vpop.permute.xlu0 %1763
        %s1766 = sor.u32 256, 8
        %1767 = vbcast.lane.b32.xlu0 %v1761, %s1766
        %v1768 = vpop.permute.xlu0 %1767
        %v1769 = vlaneseq
        %v1770 = vshrl.u32 %v1769, 7
        %v1771 = vsub.s32 1, %v1770
        %v1772 = vrot.slane %v1757, %v1771
        %1774 = vbcast.lane.b32.xlu0 %v1772, 256
        %v1775 = vpop.permute.xlu0 %1774
        %s1777 = sor.u32 256, 8
        %1778 = vbcast.lane.b32.xlu0 %v1772, %s1777
        %v1779 = vpop.permute.xlu0 %1778
        %v1780 = vlaneseq
        %v1781 = vshrl.u32 %v1780, 7
        %v1782 = vsub.s32 2, %v1781
        %v1783 = vrot.slane %v1757, %v1782
        %1785 = vbcast.lane.b32.xlu0 %v1783, 256
        %v1786 = vpop.permute.xlu0 %1785
        %s1788 = sor.u32 256, 8
        %1789 = vbcast.lane.b32.xlu0 %v1783, %s1788
        %v1790 = vpop.permute.xlu0 %1789
        %v1791 = vlaneseq
        %v1792 = vshrl.u32 %v1791, 7
        %v1793 = vsub.s32 3, %v1792
        %v1794 = vrot.slane %v1757, %v1793
        %1796 = vbcast.lane.b32.xlu0 %v1794, 256
        %v1797 = vpop.permute.xlu0 %1796
        %s1799 = sor.u32 256, 8
        %1800 = vbcast.lane.b32.xlu0 %v1794, %s1799
        %v1801 = vpop.permute.xlu0 %1800
        %v1802 = vlaneseq
        %v1803 = vshrl.u32 %v1802, 7
        %v1804 = vsub.s32 4, %v1803
        %v1805 = vrot.slane %v1757, %v1804
        %1807 = vbcast.lane.b32.xlu0 %v1805, 256
        %v1808 = vpop.permute.xlu0 %1807
        %s1810 = sor.u32 256, 8
        %1811 = vbcast.lane.b32.xlu0 %v1805, %s1810
        %v1812 = vpop.permute.xlu0 %1811
        %v1813 = vlaneseq
        %v1814 = vshrl.u32 %v1813, 7
        %v1815 = vsub.s32 5, %v1814
        %v1816 = vrot.slane %v1757, %v1815
        %1818 = vbcast.lane.b32.xlu0 %v1816, 256
        %v1819 = vpop.permute.xlu0 %1818
        %s1821 = sor.u32 256, 8
        %1822 = vbcast.lane.b32.xlu0 %v1816, %s1821
        %v1823 = vpop.permute.xlu0 %1822
        %v1824 = vlaneseq
        %v1825 = vshrl.u32 %v1824, 7
        %v1826 = vsub.s32 6, %v1825
        %v1827 = vrot.slane %v1757, %v1826
        %1829 = vbcast.lane.b32.xlu0 %v1827, 256
        %v1830 = vpop.permute.xlu0 %1829
        %s1832 = sor.u32 256, 8
        %1833 = vbcast.lane.b32.xlu0 %v1827, %s1832
        %v1834 = vpop.permute.xlu0 %1833
        %v1835 = vlaneseq
        %v1836 = vshrl.u32 %v1835, 7
        %v1837 = vsub.s32 7, %v1836
        %v1838 = vrot.slane %v1757, %v1837
        %1840 = vbcast.lane.b32.xlu0 %v1838, 256
        %v1841 = vpop.permute.xlu0 %1840
        %s1843 = sor.u32 256, 8
        %1844 = vbcast.lane.b32.xlu0 %v1838, %s1843
        %v1845 = vpop.permute.xlu0 %1844
        %v1846 = vmul.f32 %v1764, %v1056
        %v1847 = vmul.f32 %v1768, %v1057
        %v1848 = vmul.f32 %v1775, %v1058
        %v1849 = vmul.f32 %v1779, %v1059
        %v1850 = vmul.f32 %v1786, %v1060
        %v1851 = vmul.f32 %v1790, %v1061
        %v1852 = vmul.f32 %v1797, %v1062
        %v1853 = vmul.f32 %v1801, %v1063
        %v1854 = vmul.f32 %v1808, %v1064
        %v1855 = vmul.f32 %v1812, %v1065
        %v1856 = vmul.f32 %v1819, %v1066
        %v1857 = vmul.f32 %v1823, %v1067
        %v1858 = vmul.f32 %v1830, %v1068
        %v1859 = vmul.f32 %v1834, %v1069
        %v1860 = vmul.f32 %v1841, %v1070
        %v1861 = vmul.f32 %v1845, %v1071
        %v1862 = vsel %vm1223, %v1846, 0.0
        %v1863 = vsel %vm1225, %v1847, 0.0
        %v1864 = vadd.f32 %v1862, %v1863
        %v1865 = vrot.slane %v1864, 4
        %v1866 = vadd.f32 %v1864, %v1865
        %v1867 = vrot.slane %v1866, 2
        %v1868 = vadd.f32 %v1866, %v1867
        %v1869 = vrot.slane %v1868, 1
        %v1870 = vadd.f32 %v1868, %v1869
        %v1871 = vsel %vm1223, %v1848, 0.0
        %v1872 = vsel %vm1225, %v1849, 0.0
        %v1873 = vadd.f32 %v1871, %v1872
        %v1874 = vrot.slane %v1873, 4
        %v1875 = vadd.f32 %v1873, %v1874
        %v1876 = vrot.slane %v1875, 2
        %v1877 = vadd.f32 %v1875, %v1876
        %v1878 = vrot.slane %v1877, 1
        %v1879 = vadd.f32 %v1877, %v1878
        %v1880 = vsel %vm1223, %v1850, 0.0
        %v1881 = vsel %vm1225, %v1851, 0.0
        %v1882 = vadd.f32 %v1880, %v1881
        %v1883 = vrot.slane %v1882, 4
        %v1884 = vadd.f32 %v1882, %v1883
        %v1885 = vrot.slane %v1884, 2
        %v1886 = vadd.f32 %v1884, %v1885
        %v1887 = vrot.slane %v1886, 1
        %v1888 = vadd.f32 %v1886, %v1887
        %v1889 = vsel %vm1223, %v1852, 0.0
        %v1890 = vsel %vm1225, %v1853, 0.0
        %v1891 = vadd.f32 %v1889, %v1890
        %v1892 = vrot.slane %v1891, 4
        %v1893 = vadd.f32 %v1891, %v1892
        %v1894 = vrot.slane %v1893, 2
        %v1895 = vadd.f32 %v1893, %v1894
        %v1896 = vrot.slane %v1895, 1
        %v1897 = vadd.f32 %v1895, %v1896
        %v1898 = vsel %vm1223, %v1854, 0.0
        %v1899 = vsel %vm1225, %v1855, 0.0
        %v1900 = vadd.f32 %v1898, %v1899
        %v1901 = vrot.slane %v1900, 4
        %v1902 = vadd.f32 %v1900, %v1901
        %v1903 = vrot.slane %v1902, 2
        %v1904 = vadd.f32 %v1902, %v1903
        %v1905 = vrot.slane %v1904, 1
        %v1906 = vadd.f32 %v1904, %v1905
        %v1907 = vsel %vm1223, %v1856, 0.0
        %v1908 = vsel %vm1225, %v1857, 0.0
        %v1909 = vadd.f32 %v1907, %v1908
        %v1910 = vrot.slane %v1909, 4
        %v1911 = vadd.f32 %v1909, %v1910
        %v1912 = vrot.slane %v1911, 2
        %v1913 = vadd.f32 %v1911, %v1912
        %v1914 = vrot.slane %v1913, 1
        %v1915 = vadd.f32 %v1913, %v1914
        %v1916 = vsel %vm1223, %v1858, 0.0
        %v1917 = vsel %vm1225, %v1859, 0.0
        %v1918 = vadd.f32 %v1916, %v1917
        %v1919 = vrot.slane %v1918, 4
        %v1920 = vadd.f32 %v1918, %v1919
        %v1921 = vrot.slane %v1920, 2
        %v1922 = vadd.f32 %v1920, %v1921
        %v1923 = vrot.slane %v1922, 1
        %v1924 = vadd.f32 %v1922, %v1923
        %v1925 = vsel %vm1223, %v1860, 0.0
        %v1926 = vsel %vm1225, %v1861, 0.0
        %v1927 = vadd.f32 %v1925, %v1926
        %v1928 = vrot.slane %v1927, 4
        %v1929 = vadd.f32 %v1927, %v1928
        %v1930 = vrot.slane %v1929, 2
        %v1931 = vadd.f32 %v1929, %v1930
        %v1932 = vrot.slane %v1931, 1
        %v1933 = vadd.f32 %v1931, %v1932
        %v1942 = vsel %vm1305, %v1879, %v1870
        %v1943 = vsel %vm1307, %v1888, %v1942
        %v1944 = vsel %vm1309, %v1897, %v1943
        %v1945 = vsel %vm1311, %v1906, %v1944
        %v1946 = vsel %vm1313, %v1915, %v1945
        %v1947 = vsel %vm1315, %v1924, %v1946
        %v1948 = vsel %vm1317, %v1933, %v1947
        %1949 = vrot.lane.b32.xlu0 %v1948, 48
        %v1950 = vpop.permute.xlu0 %1949
        %vm1952 = vcmask 523648
        %1953 = vst.msk [vmem:[%s427] sm:$0xff] %vm1952, %v1950
        %s1954 = sand.u32 %s227, 1
        %s1955 = scalar_lea.sflag [#allocation4], %s1954
        %s1956 = sand.u32 %s227, 1
        %s1957 = smul.addr %s1956, 8
        %s1958 = scalar_lea.vmem [#allocation10], %s1957
        // Predicated region
        $region65: #{tpu_custom_call.1} parent=47 // pred_check
          %p1959 = pneg %p237
        $region66: #{tpu_custom_call.1} parent=47 // pred_check_branch
          %1961 = sbr.rel (%p1959) target = $region68
        $region67: #{tpu_custom_call.1} parent=47 // pred_region
          %s1963 = ssub.s32 128, 128
          %1964 = vsyncadd %s1955, %s1963
          %s1965 = sadd.s32 %s35, %s34
          %s1966 = smul.addr %s1965, 128
          %s1967 = scalar_lea.hbm %s7, %s1966
          %s1969 = sshll.u32 %s1958, 4
          %s1970 = int_to_ptr.vmem [resolvable:$true] %s1969
          %1972 = dma.vmem_to_hbm [thread:$0]  %s1970, 128, %s1967, %s1955
        $region68: #{tpu_custom_call.1} parent=47 // pred_fallthru
          _
      $region48: #{tpu_custom_call.1} parent=5 // pred_fallthru
        _
      %p1973 = scmp.le.s32.totalorder 2, %s25
      // Predicated region
      $region69: #{tpu_custom_call.1} parent=5 // pred_check
        %p1974 = pneg %p1973
      $region70: #{tpu_custom_call.1} parent=5 // pred_check_branch
        %1976 = sbr.rel (%p1974) target = $region72
      $region71: #{tpu_custom_call.1} parent=5 // pred_region
        %s1977 = ssub.s32 %s25, 2
        // Predicated region
        $region73: #{tpu_custom_call.1} parent=71 // pred_check
          %p1978 = pneg %p243
        $region74: #{tpu_custom_call.1} parent=71 // pred_check_branch
          %1980 = sbr.rel (%p1978) target = $region76
        $region75: #{tpu_custom_call.1} parent=71 // pred_region
          %s1981 = sand.u32 %s228, 1
          %s1982 = scalar_lea.sflag [#allocation4], %s1981
          %s1983 = sand.u32 %s228, 1
          %s1984 = smul.addr %s1983, 8
          %s1985 = scalar_lea.vmem [#allocation10], %s1984
          %1986 = dma.done %s1982, 128
        $region76: #{tpu_custom_call.1} parent=71 // pred_fallthru
          _
      $region72: #{tpu_custom_call.1} parent=5 // pred_fallthru
        _
    $region6: #{tpu_custom_call.1} parent=1 // loop_footer
      %s29 = sadd.s32 1, %s25
    $region7: #{tpu_custom_call.1} parent=1 // loop_footer_branch
      %24 = sbr.rel target = $region3
    $region8: #{tpu_custom_call.1} parent=1 // loop_exit
      _
    %1987 = vsyncpa [#allocation3], 1
    %s1988 = scalar_lea.sflag [#allocation3], 1
    %1989 = vsyncpa %s1988, 1
    %1990 = vsyncpa [#allocation6], 1
    %s1991 = scalar_lea.sflag [#allocation6], 1
    %1992 = vsyncpa %s1991, 1
    %1993 = vsyncpa [#allocation9], 1
    %s1994 = scalar_lea.sflag [#allocation9], 1
    %1995 = vsyncpa %s1994, 1
    %1996 = vsyncpa [#allocation4], 1
    %s1997 = scalar_lea.sflag [#allocation4], 1
    %1998 = vsyncpa %s1997, 1

</llo_original>
